<compile_context>
chip_gen: v7x
topology: tpu7x:2x2x1
jax: 0.10.0
libtpu: 0.0.40
codegen_flags: <defaults>
</compile_context>

<pallas_src>
import jax
import jax.numpy as jnp
from jax.experimental import pallas as pl
from jax.experimental.pallas import tpu as pltpu


def _round_up(x, m):
    return (x + m - 1) // m * m


# --------------------------------------------------------------------------
# Fused kernel: attention + GRU prologue (once) + V-tiled output projection
# --------------------------------------------------------------------------
def _decoder_step_kernel(emb_ref, hid_ref, enc_ref, eproj_ref,
                         wa_h_ref, va_ref,
                         wih_ref, b_gi_ref, whh_ref, b_hn_ref,
                         wout_ref, bout_ref,
                         pred_ref, hnew_ref,
                         feats_ref):
    H = hid_ref.shape[1]

    @pl.when(pl.program_id(0) == 0)
    def _prologue():
        emb = emb_ref[...]                       # [Bp, E]     f32
        h = hid_ref[...]                         # [Bp, H]     f32
        enc = enc_ref[...]                       # [Bp, S, 2H] f32
        ep = eproj_ref[...]                      # [Bp, S, H]  f32 (= enc @ Wa_e + b_a, hoisted per sentence)

        # ---------------- Bahdanau attention ----------------
        h_proj = jnp.dot(h.astype(wa_h_ref.dtype), wa_h_ref[...],
                         preferred_element_type=jnp.float32)            # [Bp, H]
        energy = jnp.tanh(ep + h_proj[:, None, :])                      # [Bp, S, H]
        scores = jnp.sum(energy * va_ref[...][None, :, :], axis=-1)     # [Bp, S]
        scores = scores - jnp.max(scores, axis=-1, keepdims=True)
        expw = jnp.exp(scores)
        attn = expw / jnp.sum(expw, axis=-1, keepdims=True)             # softmax over S
        weighted = jnp.sum(attn[:, :, None] * enc, axis=1)              # [Bp, 2H]

        # ---------------- GRU cell (PyTorch gate order r, z, n) ----------------
        rnn_in = jnp.concatenate([emb, weighted], axis=-1)              # [Bp, E+2H]
        gi = (jnp.dot(rnn_in.astype(wih_ref.dtype), wih_ref[...],
                      preferred_element_type=jnp.float32)
              + b_gi_ref[...])                                          # [Bp, 3H] (b_ih + b_hh folded for r,z)
        gh = jnp.dot(h.astype(whh_ref.dtype), whh_ref[...],
                     preferred_element_type=jnp.float32)                # [Bp, 3H]
        r = jax.nn.sigmoid(gi[:, 0:H] + gh[:, 0:H])
        z = jax.nn.sigmoid(gi[:, H:2 * H] + gh[:, H:2 * H])
        n = jnp.tanh(gi[:, 2 * H:3 * H] + r * (gh[:, 2 * H:3 * H] + b_hn_ref[...]))
        h_new = (1.0 - z) * n + z * h                                   # [Bp, H]

        hnew_ref[...] = h_new.astype(hnew_ref.dtype)
        # fc_out features cat(out1, weighted, embedded) stay resident in VMEM
        # as bf16 for the whole vocab sweep (no HBM round-trip).
        feats_ref[...] = jnp.concatenate([h_new, weighted, emb],
                                         axis=-1).astype(feats_ref.dtype)

    # ---- per-tile output projection: the HBM weight stream is the roofline ----
    # TODO(synk): optional int8 (v5e/v6e) / fp8 (v7x) W_out with per-tile scales
    # would halve the dominant weight stream; needs a calibration path.
    acc = jnp.dot(feats_ref[...], wout_ref[...],
                  preferred_element_type=jnp.float32)                   # [Bp, TV] f32
    pred_ref[...] = (acc + bout_ref[...]).astype(pred_ref.dtype)


# --------------------------------------------------------------------------
# One-time / per-sentence preparation (hoisted off the per-step path)
# --------------------------------------------------------------------------
def prepare_decoder_params(params, *, tile_v=2048):
    """One-time parameter prep.

    * Chooses a lane-dense vocab tile TV (multiple of 256 so v6e/v7x MXU N-tiles
      are full).  2048-4096 keeps grid-step overhead to a few us per decode step
      while double-buffered bf16 weight tiles stay well inside scoped VMEM on
      v5e / v6e / v7x.
    * Pads fc_out (W_out, b_out) to a TV multiple ONCE, instead of re-padding a
      30-50 MB weight on every decode step.
    """
    V = params["wout"].shape[1]
    TV = min(_round_up(max(tile_v, 256), 256), _round_up(V, 256))
    Vp = _round_up(V, TV)
    wout, bout = params["wout"], params["b_out"]
    if Vp != V:
        wout = jnp.pad(wout, ((0, 0), (0, Vp - V)))
        bout = jnp.pad(bout, ((0, 0), (0, Vp - V)))
    prepared = dict(params)
    prepared.update(wout_p=wout, b_out_p=bout, tile_v=TV, v=V, vp=Vp)
    return prepared


def prepare_source(encoder_outputs, params):
    """Per-source-sentence prep (step-invariant, reused by every decode step).

    * Pads the batch to a sublane multiple (8) once.
    * Precomputes the encoder-side attention projection enc @ Wa_e + b_a,
      otherwise the second-largest per-step cost after the W_out stream.
    """
    B = encoder_outputs.shape[0]
    Bp = _round_up(B, 8)
    if Bp != B:
        encoder_outputs = jnp.pad(encoder_outputs, ((0, Bp - B), (0, 0), (0, 0)))
    enc_proj = (jnp.einsum("bsk,kh->bsh",
                           encoder_outputs.astype(params["wa_e"].dtype),
                           params["wa_e"],
                           preferred_element_type=jnp.float32)
                + params["b_a"])                                        # [Bp, S, H] f32
    return encoder_outputs, enc_proj


# --------------------------------------------------------------------------
# Per-step wrapper
# --------------------------------------------------------------------------
def gru_at_decoder_step(tokens, hidden, enc_p, enc_proj_p, prepared):
    """One decode step.  Returns (prediction [B, V] f32, new_hidden [B, H] f32).

    Deployment note: the step is weight-bandwidth bound at Bp=8; batching more
    concurrent sequences (up to ~128) amortizes the same W_out stream for
    almost no extra cost and is the biggest throughput lever.
    """
    B = tokens.shape[0]
    H = hidden.shape[1]
    Bp, S, H2 = enc_p.shape
    E = prepared["emb_table"].shape[1]
    F = H + H2 + E
    V, Vp, TV = prepared["v"], prepared["vp"], prepared["tile_v"]
    assert Bp == _round_up(B, 8), "enc_p must come from prepare_source (batch-padded)"
    assert prepared["wout_p"].shape == (F, Vp)

    # Tiny per-step glue: embedding gather (dropout = identity) + padding of the
    # [B]-sized recurrent state.  The big step-invariant tensors are pre-padded.
    pad_b = Bp - B
    tokens_p = jnp.pad(tokens, (0, pad_b)) if pad_b else tokens
    hidden_p = jnp.pad(hidden, ((0, pad_b), (0, 0))) if pad_b else hidden
    emb_p = prepared["emb_table"][tokens_p]                             # [Bp, E]

    # Scoped-VMEM budget: streamed tiles are double-buffered; resident constants
    # counted twice as headroom.  Floor at 32 MiB (v6e/v7x default; v5e's 16 MiB
    # scoped default is the real constraint and its physical VMEM is 128 MiB).
    w_item = jnp.dtype(prepared["wout_p"].dtype).itemsize
    stream_bytes = 2 * (F * TV * w_item + TV * 4 + Bp * TV * 4)
    resident_bytes = ((Bp * E + Bp * H + Bp * S * H2 + Bp * S * H) * 4
                      + (H * H + (E + H2) * 3 * H + H * 3 * H) * 2
                      + 5 * H * 4
                      + Bp * F * 2 + Bp * H * 4)
    vmem_limit = int(min(max(stream_bytes + 2 * resident_bytes + (8 << 20),
                             32 << 20), 100 << 20))

    const2 = lambda j: (0, 0)
    const3 = lambda j: (0, 0, 0)

    pred_p, h_new_p = pl.pallas_call(
        _decoder_step_kernel,
        out_shape=(jax.ShapeDtypeStruct((Bp, Vp), jnp.float32),
                   jax.ShapeDtypeStruct((Bp, H), jnp.float32)),
        grid=(Vp // TV,),
        in_specs=[
            pl.BlockSpec((Bp, E), const2),             # embedded tokens
            pl.BlockSpec((Bp, H), const2),             # hidden
            pl.BlockSpec((Bp, S, H2), const3),         # encoder outputs
            pl.BlockSpec((Bp, S, H), const3),          # hoisted encoder attention keys
            pl.BlockSpec((H, H), const2),              # Wa_h
            pl.BlockSpec((1, H), const2),              # v_a
            pl.BlockSpec((E + H2, 3 * H), const2),     # W_ih (fused, pre-transposed)
            pl.BlockSpec((1, 3 * H), const2),          # folded input/hidden biases
            pl.BlockSpec((H, 3 * H), const2),          # W_hh
            pl.BlockSpec((1, H), const2),              # b_hn
            # Streamed lane-dense weight/bias tiles (double-buffered by BlockSpec
            # pipelining).  On v7x, pipeline_mode=pl.Buffered(3) on the weight
            # spec is a cheap knob to hide DMA jitter.
            pl.BlockSpec((F, TV), lambda j: (0, j)),
            pl.BlockSpec((1, TV), lambda j: (0, j)),
        ],
        out_specs=(pl.BlockSpec((Bp, TV), lambda j: (0, j)),
                   pl.BlockSpec((Bp, H), const2)),
        scratch_shapes=[pltpu.VMEM((Bp, F), jnp.bfloat16)],             # feats, VMEM-resident
        compiler_params=pltpu.CompilerParams(
            # "arbitrary": feats / h_new live in (per-core) VMEM across the vocab
            # sweep, so one TensorCore must visit the whole axis.  To split the
            # sweep across v7x's two TCs, un-fuse the prologue into its own call
            # and mark this axis parallel / CORE_PARALLEL instead.
            dimension_semantics=("arbitrary",),
            vmem_limit_bytes=vmem_limit,
        ),
    )(emb_p, hidden_p, enc_p, enc_proj_p,
      prepared["wa_h"], prepared["v_a"],
      prepared["wih"], prepared["b_gi"], prepared["whh"], prepared["b_hn"],
      prepared["wout_p"], prepared["b_out_p"])

    # Padded vocab columns (zero weight + zero bias -> logit 0) and padded batch
    # rows are sliced off here so callers never observe them.
    return pred_p[:B, :V], h_new_p[:B, :H]


# --------------------------------------------------------------------------
# Parameters (synthetic, shapes matching the torch module, pre-fused for TPU)
# --------------------------------------------------------------------------
def init_params(key, output_dim, emb_dim, hid_dim):
    """Deterministic synthetic parameters: weight matrices bf16 (streamed),
    biases f32; GRU W_ih fused/transposed, r/z biases pre-folded."""
    ks = jax.random.split(key, 12)
    f = lambda k, shape: jax.random.normal(k, shape, jnp.float32) * 0.1
    w16 = lambda k, shape: f(k, shape).astype(jnp.bfloat16)
    H, E, V = hid_dim, emb_dim, output_dim

    b_ih = f(ks[6], (1, 3 * H))
    b_hh = f(ks[7], (1, 3 * H))
    b_gi = b_ih + jnp.concatenate(
        [b_hh[:, :2 * H], jnp.zeros((1, H), jnp.float32)], axis=-1)
    b_hn = b_hh[:, 2 * H:]

    return {
        # nn.Embedding(output_dim, emb_dim)
        "emb_table": f(ks[0], (V, E)),
        # Attention: Linear(2H + H, H) split column-wise; v = Linear(H, 1, bias=False)
        "wa_h": w16(ks[1], (H, H)),
        "wa_e": w16(ks[2], (2 * H, H)),
        "b_a": f(ks[3], (1, H)),
        "v_a": f(ks[4], (1, H)),
        # nn.GRU(2H + E, H): W_ih^T fused [E + 2H, 3H] (rows: embedded, weighted), W_hh^T [H, 3H]
        "wih": w16(ks[5], (E + 2 * H, 3 * H)),
        "b_gi": b_gi,
        "whh": w16(ks[8], (H, 3 * H)),
        "b_hn": b_hn,
        # fc_out = Linear(H + 2H + E, V), rows ordered (out1, weighted, embedded)
        "wout": w16(ks[9], (H + 2 * H + E, V)),
        "b_out": f(ks[10], (1, V)),
    }


# --------------------------------------------------------------------------
# Pure-JAX reference (same bf16-weight / f32-accumulate casting as the kernel)
# --------------------------------------------------------------------------
def _reference_step(tokens, hidden, encoder_outputs, params):
    H = hidden.shape[1]
    emb = params["emb_table"][tokens]
    ep = (jnp.einsum("bsk,kh->bsh", encoder_outputs.astype(jnp.bfloat16),
                     params["wa_e"], preferred_element_type=jnp.float32)
          + params["b_a"])
    h_proj = jnp.dot(hidden.astype(jnp.bfloat16), params["wa_h"],
                     preferred_element_type=jnp.float32)
    energy = jnp.tanh(ep + h_proj[:, None, :])
    scores = jnp.sum(energy * params["v_a"][None, :, :], axis=-1)
    attn = jax.nn.softmax(scores, axis=-1)
    weighted = jnp.einsum("bs,bsk->bk", attn, encoder_outputs)
    rnn_in = jnp.concatenate([emb, weighted], axis=-1)
    gi = jnp.dot(rnn_in.astype(jnp.bfloat16), params["wih"],
                 preferred_element_type=jnp.float32) + params["b_gi"]
    gh = jnp.dot(hidden.astype(jnp.bfloat16), params["whh"],
                 preferred_element_type=jnp.float32)
    r = jax.nn.sigmoid(gi[:, :H] + gh[:, :H])
    z = jax.nn.sigmoid(gi[:, H:2 * H] + gh[:, H:2 * H])
    n = jnp.tanh(gi[:, 2 * H:] + r * (gh[:, 2 * H:] + params["b_hn"]))
    h_new = (1.0 - z) * n + z * hidden
    feats = jnp.concatenate([h_new, weighted, emb], axis=-1).astype(jnp.bfloat16)
    pred = jnp.dot(feats, params["wout"],
                   preferred_element_type=jnp.float32) + params["b_out"]
    return pred, h_new


if __name__ == "__main__":
    # Small but lane/sublane-friendly shapes implied by the forward:
    # batch=2, src_len=8, emb_dim=hid_dim=128, vocab=512.
    B, S = 2, 8
    E, H, V = 128, 128, 512

    key = jax.random.PRNGKey(0)
    k_tok, k_hid, k_enc, k_par = jax.random.split(key, 4)

    params = init_params(k_par, output_dim=V, emb_dim=E, hid_dim=H)
    # tile_v=256 here so the toy vocab still yields a 2-step grid and exercises
    # the pl.when-gated prologue + VMEM residency; the production default in
    # prepare_decoder_params is tile_v=2048.
    prepared = prepare_decoder_params(params, tile_v=256)

    tokens = jax.random.randint(k_tok, (B,), 0, V, dtype=jnp.int32)
    hidden = jax.random.normal(k_hid, (B, H), jnp.float32)
    encoder_outputs = jax.random.normal(k_enc, (B, S, 2 * H), jnp.float32)

    # Per-source-sentence, step-invariant setup (hoisted out of the decode loop).
    enc_p, enc_proj_p = prepare_source(encoder_outputs, params)

    @jax.jit
    def step(tokens, hidden, enc_p, enc_proj_p):
        return gru_at_decoder_step(tokens, hidden, enc_p, enc_proj_p, prepared)

    prediction, new_hidden = step(tokens, hidden, enc_p, enc_proj_p)
    jax.block_until_ready((prediction, new_hidden))

    assert prediction.shape == (B, V) and new_hidden.shape == (B, H)
    assert bool(jnp.all(jnp.isfinite(prediction)))
    assert bool(jnp.all(jnp.isfinite(new_hidden)))

    pred_ref, h_ref = _reference_step(tokens, hidden, encoder_outputs, params)
    assert bool(jnp.allclose(new_hidden, h_ref, rtol=5e-2, atol=5e-2))
    assert bool(jnp.allclose(prediction, pred_ref, rtol=5e-2, atol=5e-2))

    print("KERNEL_OK")
</pallas_src>

<mosaic_0001>
module attributes {stable_mosaic.version = 11 : i64} {
  func.func @_decoder_step_kernel(%arg0: i32, %arg1: memref<8x128xf32, #tpu.memory_space<vmem>>, %arg2: memref<8x128xf32, #tpu.memory_space<vmem>>, %arg3: memref<8x8x256xf32, #tpu.memory_space<vmem>>, %arg4: memref<8x8x128xf32, #tpu.memory_space<vmem>>, %arg5: memref<128x128xbf16, #tpu.memory_space<vmem>>, %arg6: memref<1x128xf32, #tpu.memory_space<vmem>>, %arg7: memref<384x384xbf16, #tpu.memory_space<vmem>>, %arg8: memref<1x384xf32, #tpu.memory_space<vmem>>, %arg9: memref<128x384xbf16, #tpu.memory_space<vmem>>, %arg10: memref<1x128xf32, #tpu.memory_space<vmem>>, %arg11: memref<512x256xbf16, #tpu.memory_space<vmem>>, %arg12: memref<1x256xf32, #tpu.memory_space<vmem>>, %arg13: memref<8x256xf32, #tpu.memory_space<vmem>>, %arg14: memref<8x128xf32, #tpu.memory_space<vmem>>, %arg15: memref<8x512xbf16, #tpu.memory_space<vmem>>) attributes {dimension_semantics = [#tpu.dimension_semantics<arbitrary>], iteration_bounds = array<i64: 2>, scalar_prefetch = 0 : i64, scratch_operands = 1 : i64, tpu.core_type = #tpu.core_type<tc>, window_params = [{pipeline_mode = #tpu.pipeline_mode<synchronous>, transform_indices = @transform_0, window_bounds = array<i64: 8, 128>}, {pipeline_mode = #tpu.pipeline_mode<synchronous>, transform_indices = @transform_1, window_bounds = array<i64: 8, 128>}, {pipeline_mode = #tpu.pipeline_mode<synchronous>, transform_indices = @transform_2, window_bounds = array<i64: 8, 8, 256>}, {pipeline_mode = #tpu.pipeline_mode<synchronous>, transform_indices = @transform_3, window_bounds = array<i64: 8, 8, 128>}, {pipeline_mode = #tpu.pipeline_mode<synchronous>, transform_indices = @transform_4, window_bounds = array<i64: 128, 128>}, {pipeline_mode = #tpu.pipeline_mode<synchronous>, transform_indices = @transform_5, window_bounds = array<i64: 1, 128>}, {pipeline_mode = #tpu.pipeline_mode<synchronous>, transform_indices = @transform_6, window_bounds = array<i64: 384, 384>}, {pipeline_mode = #tpu.pipeline_mode<synchronous>, transform_indices = @transform_7, window_bounds = array<i64: 1, 384>}, {pipeline_mode = #tpu.pipeline_mode<synchronous>, transform_indices = @transform_8, window_bounds = array<i64: 128, 384>}, {pipeline_mode = #tpu.pipeline_mode<synchronous>, transform_indices = @transform_9, window_bounds = array<i64: 1, 128>}, {transform_indices = @transform_10, window_bounds = array<i64: 512, 256>}, {transform_indices = @transform_11, window_bounds = array<i64: 1, 256>}, {transform_indices = @transform_12, window_bounds = array<i64: 8, 256>}, {pipeline_mode = #tpu.pipeline_mode<synchronous>, transform_indices = @transform_13, window_bounds = array<i64: 8, 128>}]} {
    %c0_i32 = arith.constant 0 : i32
    %0 = arith.cmpi eq, %arg0, %c0_i32 : i32
    %1 = arith.extui %0 : i1 to i32
    %c0_i32_0 = arith.constant 0 : i32
    %2 = arith.cmpi ne, %1, %c0_i32_0 : i32
    scf.if %2 {
      %c0_8 = arith.constant 0 : index
      %c0_9 = arith.constant 0 : index
      %10 = vector.load %arg1[%c0_8, %c0_9] : memref<8x128xf32, #tpu.memory_space<vmem>>, vector<8x128xf32>
      %c0_10 = arith.constant 0 : index
      %c0_11 = arith.constant 0 : index
      %11 = vector.load %arg2[%c0_10, %c0_11] : memref<8x128xf32, #tpu.memory_space<vmem>>, vector<8x128xf32>
      %c0_12 = arith.constant 0 : index
      %c0_13 = arith.constant 0 : index
      %c0_14 = arith.constant 0 : index
      %12 = vector.load %arg3[%c0_12, %c0_13, %c0_14] : memref<8x8x256xf32, #tpu.memory_space<vmem>>, vector<8x8x256xf32>
      %c0_15 = arith.constant 0 : index
      %c0_16 = arith.constant 0 : index
      %c0_17 = arith.constant 0 : index
      %13 = vector.load %arg4[%c0_15, %c0_16, %c0_17] : memref<8x8x128xf32, #tpu.memory_space<vmem>>, vector<8x8x128xf32>
      %14 = arith.truncf %11 : vector<8x128xf32> to vector<8x128xbf16>
      %c0_18 = arith.constant 0 : index
      %c0_19 = arith.constant 0 : index
      %15 = vector.load %arg5[%c0_18, %c0_19] : memref<128x128xbf16, #tpu.memory_space<vmem>>, vector<128x128xbf16>
      %cst_20 = arith.constant dense<0.000000e+00> : vector<8x128xf32>
      %16 = tpu.matmul %14, %15, %cst_20 {dimension_numbers = #tpu.dot_dimension_numbers<[1], [0], [0], [1], [0, 0, 1, 1], [], []>} : vector<8x128xbf16>, vector<128x128xbf16>, vector<8x128xf32> -> vector<8x128xf32>
      %17 = vector.shape_cast %16 : vector<8x128xf32> to vector<8x1x128xf32>
      %18 = vector.broadcast %17 : vector<8x1x128xf32> to vector<8x8x128xf32>
      %19 = arith.addf %13, %18 : vector<8x8x128xf32>
      %20 = math.tanh %19 : vector<8x8x128xf32>
      %c0_21 = arith.constant 0 : index
      %c0_22 = arith.constant 0 : index
      %21 = vector.load %arg6[%c0_21, %c0_22] : memref<1x128xf32, #tpu.memory_space<vmem>>, vector<1x128xf32>
      %22 = vector.shape_cast %21 : vector<1x128xf32> to vector<1x1x128xf32>
      %23 = vector.broadcast %22 : vector<1x1x128xf32> to vector<8x8x128xf32>
      %24 = arith.mulf %20, %23 : vector<8x8x128xf32>
      %cst_23 = arith.constant dense<0.000000e+00> : vector<8x8xf32>
      %25 = vector.multi_reduction <add>, %24, %cst_23 [2] : vector<8x8x128xf32> to vector<8x8xf32>
      %cst_24 = arith.constant dense<0xFF800000> : vector<8xf32>
      %26 = vector.multi_reduction <maximumf>, %25, %cst_24 [1] : vector<8x8xf32> to vector<8xf32>
      %27 = vector.shape_cast %26 : vector<8xf32> to vector<8x1xf32>
      %28 = vector.broadcast %27 : vector<8x1xf32> to vector<8x8xf32>
      %29 = arith.subf %25, %28 : vector<8x8xf32>
      %30 = math.exp %29 : vector<8x8xf32>
      %cst_25 = arith.constant dense<0.000000e+00> : vector<8xf32>
      %31 = vector.multi_reduction <add>, %30, %cst_25 [1] : vector<8x8xf32> to vector<8xf32>
      %32 = vector.shape_cast %31 : vector<8xf32> to vector<8x1xf32>
      %33 = vector.broadcast %32 : vector<8x1xf32> to vector<8x8xf32>
      %34 = arith.divf %30, %33 : vector<8x8xf32>
      %35 = vector.shape_cast %34 : vector<8x8xf32> to vector<8x8x1xf32>
      %36 = vector.broadcast %35 : vector<8x8x1xf32> to vector<8x8x256xf32>
      %37 = arith.mulf %36, %12 : vector<8x8x256xf32>
      %cst_26 = arith.constant dense<0.000000e+00> : vector<8x256xf32>
      %38 = vector.multi_reduction <add>, %37, %cst_26 [1] : vector<8x8x256xf32> to vector<8x256xf32>
      %39 = tpu.concatenate %10, %38 in 1 : vector<8x128xf32>, vector<8x256xf32> -> vector<8x384xf32>
      %40 = arith.truncf %39 : vector<8x384xf32> to vector<8x384xbf16>
      %c0_27 = arith.constant 0 : index
      %c0_28 = arith.constant 0 : index
      %41 = vector.load %arg7[%c0_27, %c0_28] : memref<384x384xbf16, #tpu.memory_space<vmem>>, vector<384x384xbf16>
      %cst_29 = arith.constant dense<0.000000e+00> : vector<8x384xf32>
      %42 = tpu.matmul %40, %41, %cst_29 {dimension_numbers = #tpu.dot_dimension_numbers<[1], [0], [0], [1], [0, 0, 1, 1], [], []>} : vector<8x384xbf16>, vector<384x384xbf16>, vector<8x384xf32> -> vector<8x384xf32>
      %c0_30 = arith.constant 0 : index
      %c0_31 = arith.constant 0 : index
      %43 = vector.load %arg8[%c0_30, %c0_31] : memref<1x384xf32, #tpu.memory_space<vmem>>, vector<1x384xf32>
      %44 = vector.broadcast %43 : vector<1x384xf32> to vector<8x384xf32>
      %45 = arith.addf %42, %44 : vector<8x384xf32>
      %46 = arith.truncf %11 : vector<8x128xf32> to vector<8x128xbf16>
      %c0_32 = arith.constant 0 : index
      %c0_33 = arith.constant 0 : index
      %47 = vector.load %arg9[%c0_32, %c0_33] : memref<128x384xbf16, #tpu.memory_space<vmem>>, vector<128x384xbf16>
      %cst_34 = arith.constant dense<0.000000e+00> : vector<8x384xf32>
      %48 = tpu.matmul %46, %47, %cst_34 {dimension_numbers = #tpu.dot_dimension_numbers<[1], [0], [0], [1], [0, 0, 1, 1], [], []>} : vector<8x128xbf16>, vector<128x384xbf16>, vector<8x384xf32> -> vector<8x384xf32>
      %49 = vector.extract_strided_slice %45 {offsets = [0, 0], sizes = [8, 128], strides = [1, 1]} : vector<8x384xf32> to vector<8x128xf32>
      %50 = vector.extract_strided_slice %48 {offsets = [0, 0], sizes = [8, 128], strides = [1, 1]} : vector<8x384xf32> to vector<8x128xf32>
      %51 = arith.addf %49, %50 : vector<8x128xf32>
      %52 = arith.negf %51 : vector<8x128xf32>
      %53 = math.exp %52 : vector<8x128xf32>
      %cst_35 = arith.constant 1.000000e+00 : f32
      %54 = vector.broadcast %cst_35 : f32 to vector<8x128xf32>
      %55 = arith.addf %54, %53 : vector<8x128xf32>
      %56 = arith.divf %54, %55 : vector<8x128xf32>
      %57 = vector.extract_strided_slice %45 {offsets = [0, 128], sizes = [8, 128], strides = [1, 1]} : vector<8x384xf32> to vector<8x128xf32>
      %58 = vector.extract_strided_slice %48 {offsets = [0, 128], sizes = [8, 128], strides = [1, 1]} : vector<8x384xf32> to vector<8x128xf32>
      %59 = arith.addf %57, %58 : vector<8x128xf32>
      %60 = arith.negf %59 : vector<8x128xf32>
      %61 = math.exp %60 : vector<8x128xf32>
      %cst_36 = arith.constant 1.000000e+00 : f32
      %62 = vector.broadcast %cst_36 : f32 to vector<8x128xf32>
      %63 = arith.addf %62, %61 : vector<8x128xf32>
      %64 = arith.divf %62, %63 : vector<8x128xf32>
      %65 = vector.extract_strided_slice %45 {offsets = [0, 256], sizes = [8, 128], strides = [1, 1]} : vector<8x384xf32> to vector<8x128xf32>
      %66 = vector.extract_strided_slice %48 {offsets = [0, 256], sizes = [8, 128], strides = [1, 1]} : vector<8x384xf32> to vector<8x128xf32>
      %c0_37 = arith.constant 0 : index
      %c0_38 = arith.constant 0 : index
      %67 = vector.load %arg10[%c0_37, %c0_38] : memref<1x128xf32, #tpu.memory_space<vmem>>, vector<1x128xf32>
      %68 = vector.broadcast %67 : vector<1x128xf32> to vector<8x128xf32>
      %69 = arith.addf %66, %68 : vector<8x128xf32>
      %70 = arith.mulf %56, %69 : vector<8x128xf32>
      %71 = arith.addf %65, %70 : vector<8x128xf32>
      %72 = math.tanh %71 : vector<8x128xf32>
      %cst_39 = arith.constant 1.000000e+00 : f32
      %73 = vector.broadcast %cst_39 : f32 to vector<8x128xf32>
      %74 = arith.subf %73, %64 : vector<8x128xf32>
      %75 = arith.mulf %74, %72 : vector<8x128xf32>
      %76 = arith.mulf %64, %11 : vector<8x128xf32>
      %77 = arith.addf %75, %76 : vector<8x128xf32>
      %c0_40 = arith.constant 0 : index
      %c0_41 = arith.constant 0 : index
      %78 = vector.load %arg14[%c0_40, %c0_41] : memref<8x128xf32, #tpu.memory_space<vmem>>, vector<8x128xf32>
      tpu.vector_store %arg14[%c0_40, %c0_41], %77 {strides = array<i32>} : memref<8x128xf32, #tpu.memory_space<vmem>>, vector<8x128xf32>,
      %79 = tpu.concatenate %77, %38, %10 in 1 : vector<8x128xf32>, vector<8x256xf32>, vector<8x128xf32> -> vector<8x512xf32>
      %80 = arith.truncf %79 : vector<8x512xf32> to vector<8x512xbf16>
      %c0_42 = arith.constant 0 : index
      %c0_43 = arith.constant 0 : index
      %81 = vector.load %arg15[%c0_42, %c0_43] : memref<8x512xbf16, #tpu.memory_space<vmem>>, vector<8x512xbf16>
      tpu.vector_store %arg15[%c0_42, %c0_43], %80 {strides = array<i32>} : memref<8x512xbf16, #tpu.memory_space<vmem>>, vector<8x512xbf16>,
    } else {
    }
    %c0 = arith.constant 0 : index
    %c0_1 = arith.constant 0 : index
    %3 = vector.load %arg15[%c0, %c0_1] : memref<8x512xbf16, #tpu.memory_space<vmem>>, vector<8x512xbf16>
    %c0_2 = arith.constant 0 : index
    %c0_3 = arith.constant 0 : index
    %4 = vector.load %arg11[%c0_2, %c0_3] : memref<512x256xbf16, #tpu.memory_space<vmem>>, vector<512x256xbf16>
    %cst = arith.constant dense<0.000000e+00> : vector<8x256xf32>
    %5 = tpu.matmul %3, %4, %cst {dimension_numbers = #tpu.dot_dimension_numbers<[1], [0], [0], [1], [0, 0, 1, 1], [], []>} : vector<8x512xbf16>, vector<512x256xbf16>, vector<8x256xf32> -> vector<8x256xf32>
    %c0_4 = arith.constant 0 : index
    %c0_5 = arith.constant 0 : index
    %6 = vector.load %arg12[%c0_4, %c0_5] : memref<1x256xf32, #tpu.memory_space<vmem>>, vector<1x256xf32>
    %7 = vector.broadcast %6 : vector<1x256xf32> to vector<8x256xf32>
    %8 = arith.addf %5, %7 : vector<8x256xf32>
    %c0_6 = arith.constant 0 : index
    %c0_7 = arith.constant 0 : index
    %9 = vector.load %arg13[%c0_6, %c0_7] : memref<8x256xf32, #tpu.memory_space<vmem>>, vector<8x256xf32>
    tpu.vector_store %arg13[%c0_6, %c0_7], %8 {strides = array<i32>} : memref<8x256xf32, #tpu.memory_space<vmem>>, vector<8x256xf32>,
    return
  }
  func.func @transform_0(%arg0: i32) -> (i32, i32) {
    %c0_i32 = arith.constant 0 : i32
    %c0_i32_0 = arith.constant 0 : i32
    %c0_i32_1 = arith.constant 0 : i32
    return %c0_i32, %c0_i32_0 : i32, i32
  }
  func.func @transform_1(%arg0: i32) -> (i32, i32) {
    %c0_i32 = arith.constant 0 : i32
    %c0_i32_0 = arith.constant 0 : i32
    %c0_i32_1 = arith.constant 0 : i32
    return %c0_i32, %c0_i32_0 : i32, i32
  }
  func.func @transform_2(%arg0: i32) -> (i32, i32, i32) {
    %c0_i32 = arith.constant 0 : i32
    %c0_i32_0 = arith.constant 0 : i32
    %c0_i32_1 = arith.constant 0 : i32
    %c0_i32_2 = arith.constant 0 : i32
    return %c0_i32, %c0_i32_0, %c0_i32_1 : i32, i32, i32
  }
  func.func @transform_3(%arg0: i32) -> (i32, i32, i32) {
    %c0_i32 = arith.constant 0 : i32
    %c0_i32_0 = arith.constant 0 : i32
    %c0_i32_1 = arith.constant 0 : i32
    %c0_i32_2 = arith.constant 0 : i32
    return %c0_i32, %c0_i32_0, %c0_i32_1 : i32, i32, i32
  }
  func.func @transform_4(%arg0: i32) -> (i32, i32) {
    %c0_i32 = arith.constant 0 : i32
    %c0_i32_0 = arith.constant 0 : i32
    %c0_i32_1 = arith.constant 0 : i32
    return %c0_i32, %c0_i32_0 : i32, i32
  }
  func.func @transform_5(%arg0: i32) -> (i32, i32) {
    %c0_i32 = arith.constant 0 : i32
    %c0_i32_0 = arith.constant 0 : i32
    %c0_i32_1 = arith.constant 0 : i32
    return %c0_i32, %c0_i32_0 : i32, i32
  }
  func.func @transform_6(%arg0: i32) -> (i32, i32) {
    %c0_i32 = arith.constant 0 : i32
    %c0_i32_0 = arith.constant 0 : i32
    %c0_i32_1 = arith.constant 0 : i32
    return %c0_i32, %c0_i32_0 : i32, i32
  }
  func.func @transform_7(%arg0: i32) -> (i32, i32) {
    %c0_i32 = arith.constant 0 : i32
    %c0_i32_0 = arith.constant 0 : i32
    %c0_i32_1 = arith.constant 0 : i32
    return %c0_i32, %c0_i32_0 : i32, i32
  }
  func.func @transform_8(%arg0: i32) -> (i32, i32) {
    %c0_i32 = arith.constant 0 : i32
    %c0_i32_0 = arith.constant 0 : i32
    %c0_i32_1 = arith.constant 0 : i32
    return %c0_i32, %c0_i32_0 : i32, i32
  }
  func.func @transform_9(%arg0: i32) -> (i32, i32) {
    %c0_i32 = arith.constant 0 : i32
    %c0_i32_0 = arith.constant 0 : i32
    %c0_i32_1 = arith.constant 0 : i32
    return %c0_i32, %c0_i32_0 : i32, i32
  }
  func.func @transform_10(%arg0: i32) -> (i32, i32) {
    %c0_i32 = arith.constant 0 : i32
    %c0_i32_0 = arith.constant 0 : i32
    return %c0_i32, %arg0 : i32, i32
  }
  func.func @transform_11(%arg0: i32) -> (i32, i32) {
    %c0_i32 = arith.constant 0 : i32
    %c0_i32_0 = arith.constant 0 : i32
    return %c0_i32, %arg0 : i32, i32
  }
  func.func @transform_12(%arg0: i32) -> (i32, i32) {
    %c0_i32 = arith.constant 0 : i32
    %c0_i32_0 = arith.constant 0 : i32
    return %c0_i32, %arg0 : i32, i32
  }
  func.func @transform_13(%arg0: i32) -> (i32, i32) {
    %c0_i32 = arith.constant 0 : i32
    %c0_i32_0 = arith.constant 0 : i32
    %c0_i32_1 = arith.constant 0 : i32
    return %c0_i32, %c0_i32_0 : i32, i32
  }
}

</mosaic_0001>

<llo_original>
// kernel: step.1
$region0: #{step.1}
  #allocation0 [shape = 'u32[]', space=smem, size = 0x4, offset = 0x4, fixed_abs, tag = 'smem constant byte address 0x4 - core index']
  #allocation1 [shape = 'u32[144,128]{1,0:T(1,128)}', space=vmem, size = 0x12000, scoped, tag = 'internal scratch']
  #allocation2 [shape = 'bf16[8,512]{1,0:T(8,128)(2,1)}', space=vmem, size = 0x2000, scoped, tag = 'scratch operand']
  %s0 = inlined_call_operand.vmem [shape: f32[8,128], index: 0, kind: input, shape index: {}]
  %s1 = inlined_call_operand.vmem [shape: f32[8,128], index: 1, kind: input, shape index: {}]
  %s2 = inlined_call_operand.vmem [shape: f32[8,8,256], index: 2, kind: input, shape index: {}]
  %s3 = inlined_call_operand.vmem [shape: f32[8,8,128], index: 3, kind: input, shape index: {}]
  %s4 = inlined_call_operand.vmem [shape: bf16[128,128], index: 4, kind: input, shape index: {}]
  %s5 = inlined_call_operand.vmem [shape: f32[1,128], index: 5, kind: input, shape index: {}]
  %s6 = inlined_call_operand.vmem [shape: bf16[384,384], index: 6, kind: input, shape index: {}]
  %s7 = inlined_call_operand.vmem [shape: f32[1,384], index: 7, kind: input, shape index: {}]
  %s8 = inlined_call_operand.vmem [shape: bf16[128,384], index: 8, kind: input, shape index: {}]
  %s9 = inlined_call_operand.vmem [shape: f32[1,128], index: 9, kind: input, shape index: {}]
  %s10 = inlined_call_operand.vmem [shape: bf16[512,512], index: 10, kind: input, shape index: {}]
  %s11 = inlined_call_operand.vmem [shape: f32[1,512], index: 11, kind: input, shape index: {}]
  %s12 = inlined_call_operand.vmem [shape: f32[8,512], index: 12, kind: output, shape index: {0}]
  %s13 = inlined_call_operand.vmem [shape: f32[8,128], index: 13, kind: output, shape index: {1}]
  %14 = xla_tuple %s12, %s13
  %s15 = sld [smem:[#allocation0]]
  $region131: #{step.1} parent=0
    _
  %s17 = ssub.s32 1, %s15
  %s18 = scalar_select 0, %s17, %s15
  $region1: #{step.1} parent=0
    #allocation3 [shape = 'u8[524288]{0}', space=vmem, size = 0x80000, scoped, tag = 'input window, operand 10']
    loop: start=0, step=1, limit=4
    $region2: #{step.1} parent=1 // loop_pre_header
      _
    $region3: #{step.1} parent=1 // loop_header
      %s20 = sphi 0, %s24
      %p21 = scmp.ge.s32.totalorder %s20, 4
      %s28 = sphi 0, %s28
      %s30 = sphi 0, %s28
      %s31 = sphi 0, %s30
      %s45 = sphi 0, %s31
      %s49 = sphi 0, %s49
      %s51 = sphi 0, %s49
      %s52 = sphi 0, %s51
      %s66 = sphi 0, %s52
      %s70 = sphi 0, %s70
      %s72 = sphi 0, %s70
      %s73 = sphi 0, %s72
      %s87 = sphi 0, %s73
      %s91 = sphi 0, %s91
      %s93 = sphi 0, %s91
      %s94 = sphi 0, %s93
      %s108 = sphi 0, %s94
      %s112 = sphi 0, %s112
      %s114 = sphi 0, %s112
      %s115 = sphi 0, %s114
      %s129 = sphi 0, %s115
      %s133 = sphi 0, %s133
      %s135 = sphi 0, %s133
      %s136 = sphi 0, %s135
      %s150 = sphi 0, %s136
      %s154 = sphi 0, %s154
      %s156 = sphi 0, %s154
      %s157 = sphi 0, %s156
      %s171 = sphi 0, %s157
      %s175 = sphi 0, %s175
      %s177 = sphi 0, %s175
      %s178 = sphi 0, %s177
      %s192 = sphi 0, %s178
      %s196 = sphi 0, %s196
      %s198 = sphi 0, %s196
      %s199 = sphi 0, %s198
      %s213 = sphi 0, %s199
      %s217 = sphi 0, %s217
      %s219 = sphi 0, %s217
      %s220 = sphi 0, %s219
      %s234 = sphi 0, %s220
      %s240 = sphi 0, %s242
      %s243 = sphi 0, %s240
      %s244 = sphi 0, %s243
      %s260 = sphi 0, %s244
      %s266 = sphi 0, %s268
      %s269 = sphi 0, %s266
      %s270 = sphi 0, %s269
      %s286 = sphi 0, %s270
      %s292 = sphi 0, %s294
      %s295 = sphi 0, %s292
      %s296 = sphi 0, %s295
      %s312 = sphi 0, %s296
      %s316 = sphi 0, %s316
      %s318 = sphi 0, %s316
      %s319 = sphi 0, %s318
      %s333 = sphi 0, %s319
    $region4: #{step.1} parent=1 // loop_header_branch
      %23 = sbr.rel (%p21) target = $region8
    $region5: #{step.1} parent=1 // loop_body
      %s25 = ssub.s32 %s20, 1
      %s26 = ssub.s32 %s20, 2
      %s27 = sadd.s32 %s20, 1
      %s29 = sadd.s32 %s28, 1
      %p32 = scmp.eq.s32.totalorder %s20, 1
      %p33 = scmp.ne.s32.totalorder %s28, %s30
      %p34 = scmp.eq.s32.totalorder %s20, 0
      %p35 = por %p33, %p34
      %p36 = scmp.ne.s32.totalorder %s28, %s30
      %p37 = scmp.eq.s32.totalorder %s25, 1
      %p38 = por %p36, %p37
      %p39 = scmp.ne.s32.totalorder %s30, %s31
      %p40 = scmp.eq.s32.totalorder %s25, 0
      %p41 = por %p39, %p40
      %p42 = scmp.ne.s32.totalorder %s30, %s31
      %p43 = scmp.eq.s32.totalorder %s26, 1
      %p44 = por %p42, %p43
      %p46 = scmp.ne.s32.totalorder %s31, %s45
      %p47 = scmp.eq.s32.totalorder %s26, 0
      %p48 = por %p46, %p47
      %s50 = sadd.s32 %s49, 1
      %p53 = scmp.eq.s32.totalorder %s20, 1
      %p54 = scmp.ne.s32.totalorder %s49, %s51
      %p55 = scmp.eq.s32.totalorder %s20, 0
      %p56 = por %p54, %p55
      %p57 = scmp.ne.s32.totalorder %s49, %s51
      %p58 = scmp.eq.s32.totalorder %s25, 1
      %p59 = por %p57, %p58
      %p60 = scmp.ne.s32.totalorder %s51, %s52
      %p61 = scmp.eq.s32.totalorder %s25, 0
      %p62 = por %p60, %p61
      %p63 = scmp.ne.s32.totalorder %s51, %s52
      %p64 = scmp.eq.s32.totalorder %s26, 1
      %p65 = por %p63, %p64
      %p67 = scmp.ne.s32.totalorder %s52, %s66
      %p68 = scmp.eq.s32.totalorder %s26, 0
      %p69 = por %p67, %p68
      %s71 = sadd.s32 %s70, 1
      %p74 = scmp.eq.s32.totalorder %s20, 1
      %p75 = scmp.ne.s32.totalorder %s70, %s72
      %p76 = scmp.eq.s32.totalorder %s20, 0
      %p77 = por %p75, %p76
      %p78 = scmp.ne.s32.totalorder %s70, %s72
      %p79 = scmp.eq.s32.totalorder %s25, 1
      %p80 = por %p78, %p79
      %p81 = scmp.ne.s32.totalorder %s72, %s73
      %p82 = scmp.eq.s32.totalorder %s25, 0
      %p83 = por %p81, %p82
      %p84 = scmp.ne.s32.totalorder %s72, %s73
      %p85 = scmp.eq.s32.totalorder %s26, 1
      %p86 = por %p84, %p85
      %p88 = scmp.ne.s32.totalorder %s73, %s87
      %p89 = scmp.eq.s32.totalorder %s26, 0
      %p90 = por %p88, %p89
      %s92 = sadd.s32 %s91, 1
      %p95 = scmp.eq.s32.totalorder %s20, 1
      %p96 = scmp.ne.s32.totalorder %s91, %s93
      %p97 = scmp.eq.s32.totalorder %s20, 0
      %p98 = por %p96, %p97
      %p99 = scmp.ne.s32.totalorder %s91, %s93
      %p100 = scmp.eq.s32.totalorder %s25, 1
      %p101 = por %p99, %p100
      %p102 = scmp.ne.s32.totalorder %s93, %s94
      %p103 = scmp.eq.s32.totalorder %s25, 0
      %p104 = por %p102, %p103
      %p105 = scmp.ne.s32.totalorder %s93, %s94
      %p106 = scmp.eq.s32.totalorder %s26, 1
      %p107 = por %p105, %p106
      %p109 = scmp.ne.s32.totalorder %s94, %s108
      %p110 = scmp.eq.s32.totalorder %s26, 0
      %p111 = por %p109, %p110
      %s113 = sadd.s32 %s112, 1
      %p116 = scmp.eq.s32.totalorder %s20, 1
      %p117 = scmp.ne.s32.totalorder %s112, %s114
      %p118 = scmp.eq.s32.totalorder %s20, 0
      %p119 = por %p117, %p118
      %p120 = scmp.ne.s32.totalorder %s112, %s114
      %p121 = scmp.eq.s32.totalorder %s25, 1
      %p122 = por %p120, %p121
      %p123 = scmp.ne.s32.totalorder %s114, %s115
      %p124 = scmp.eq.s32.totalorder %s25, 0
      %p125 = por %p123, %p124
      %p126 = scmp.ne.s32.totalorder %s114, %s115
      %p127 = scmp.eq.s32.totalorder %s26, 1
      %p128 = por %p126, %p127
      %p130 = scmp.ne.s32.totalorder %s115, %s129
      %p131 = scmp.eq.s32.totalorder %s26, 0
      %p132 = por %p130, %p131
      %s134 = sadd.s32 %s133, 1
      %p137 = scmp.eq.s32.totalorder %s20, 1
      %p138 = scmp.ne.s32.totalorder %s133, %s135
      %p139 = scmp.eq.s32.totalorder %s20, 0
      %p140 = por %p138, %p139
      %p141 = scmp.ne.s32.totalorder %s133, %s135
      %p142 = scmp.eq.s32.totalorder %s25, 1
      %p143 = por %p141, %p142
      %p144 = scmp.ne.s32.totalorder %s135, %s136
      %p145 = scmp.eq.s32.totalorder %s25, 0
      %p146 = por %p144, %p145
      %p147 = scmp.ne.s32.totalorder %s135, %s136
      %p148 = scmp.eq.s32.totalorder %s26, 1
      %p149 = por %p147, %p148
      %p151 = scmp.ne.s32.totalorder %s136, %s150
      %p152 = scmp.eq.s32.totalorder %s26, 0
      %p153 = por %p151, %p152
      %s155 = sadd.s32 %s154, 1
      %p158 = scmp.eq.s32.totalorder %s20, 1
      %p159 = scmp.ne.s32.totalorder %s154, %s156
      %p160 = scmp.eq.s32.totalorder %s20, 0
      %p161 = por %p159, %p160
      %p162 = scmp.ne.s32.totalorder %s154, %s156
      %p163 = scmp.eq.s32.totalorder %s25, 1
      %p164 = por %p162, %p163
      %p165 = scmp.ne.s32.totalorder %s156, %s157
      %p166 = scmp.eq.s32.totalorder %s25, 0
      %p167 = por %p165, %p166
      %p168 = scmp.ne.s32.totalorder %s156, %s157
      %p169 = scmp.eq.s32.totalorder %s26, 1
      %p170 = por %p168, %p169
      %p172 = scmp.ne.s32.totalorder %s157, %s171
      %p173 = scmp.eq.s32.totalorder %s26, 0
      %p174 = por %p172, %p173
      %s176 = sadd.s32 %s175, 1
      %p179 = scmp.eq.s32.totalorder %s20, 1
      %p180 = scmp.ne.s32.totalorder %s175, %s177
      %p181 = scmp.eq.s32.totalorder %s20, 0
      %p182 = por %p180, %p181
      %p183 = scmp.ne.s32.totalorder %s175, %s177
      %p184 = scmp.eq.s32.totalorder %s25, 1
      %p185 = por %p183, %p184
      %p186 = scmp.ne.s32.totalorder %s177, %s178
      %p187 = scmp.eq.s32.totalorder %s25, 0
      %p188 = por %p186, %p187
      %p189 = scmp.ne.s32.totalorder %s177, %s178
      %p190 = scmp.eq.s32.totalorder %s26, 1
      %p191 = por %p189, %p190
      %p193 = scmp.ne.s32.totalorder %s178, %s192
      %p194 = scmp.eq.s32.totalorder %s26, 0
      %p195 = por %p193, %p194
      %s197 = sadd.s32 %s196, 1
      %p200 = scmp.eq.s32.totalorder %s20, 1
      %p201 = scmp.ne.s32.totalorder %s196, %s198
      %p202 = scmp.eq.s32.totalorder %s20, 0
      %p203 = por %p201, %p202
      %p204 = scmp.ne.s32.totalorder %s196, %s198
      %p205 = scmp.eq.s32.totalorder %s25, 1
      %p206 = por %p204, %p205
      %p207 = scmp.ne.s32.totalorder %s198, %s199
      %p208 = scmp.eq.s32.totalorder %s25, 0
      %p209 = por %p207, %p208
      %p210 = scmp.ne.s32.totalorder %s198, %s199
      %p211 = scmp.eq.s32.totalorder %s26, 1
      %p212 = por %p210, %p211
      %p214 = scmp.ne.s32.totalorder %s199, %s213
      %p215 = scmp.eq.s32.totalorder %s26, 0
      %p216 = por %p214, %p215
      %s218 = sadd.s32 %s217, 1
      %p221 = scmp.eq.s32.totalorder %s20, 1
      %p222 = scmp.ne.s32.totalorder %s217, %s219
      %p223 = scmp.eq.s32.totalorder %s20, 0
      %p224 = por %p222, %p223
      %p225 = scmp.ne.s32.totalorder %s217, %s219
      %p226 = scmp.eq.s32.totalorder %s25, 1
      %p227 = por %p225, %p226
      %p228 = scmp.ne.s32.totalorder %s219, %s220
      %p229 = scmp.eq.s32.totalorder %s25, 0
      %p230 = por %p228, %p229
      %p231 = scmp.ne.s32.totalorder %s219, %s220
      %p232 = scmp.eq.s32.totalorder %s26, 1
      %p233 = por %p231, %p232
      %p235 = scmp.ne.s32.totalorder %s220, %s234
      %p236 = scmp.eq.s32.totalorder %s26, 0
      %p237 = por %p235, %p236
      %s238 = ssub.s32 %s20, %s27
      %p239 = scmp.eq.s32.totalorder %s238, 0
      %s241 = sadd.s32 %s240, 1
      %s242 = scalar_select %p239, %s240, %s241
      %p245 = pneg %p239
      %p246 = scmp.eq.s32.totalorder %s20, 1
      %p247 = por %p245, %p246
      %p248 = scmp.ne.s32.totalorder %s240, %s243
      %p249 = scmp.eq.s32.totalorder %s20, 0
      %p250 = por %p248, %p249
      %p251 = scmp.ne.s32.totalorder %s240, %s243
      %p252 = scmp.eq.s32.totalorder %s25, 1
      %p253 = por %p251, %p252
      %p254 = scmp.ne.s32.totalorder %s243, %s244
      %p255 = scmp.eq.s32.totalorder %s25, 0
      %p256 = por %p254, %p255
      %p257 = scmp.ne.s32.totalorder %s243, %s244
      %p258 = scmp.eq.s32.totalorder %s26, 1
      %p259 = por %p257, %p258
      %p261 = scmp.ne.s32.totalorder %s244, %s260
      %p262 = scmp.eq.s32.totalorder %s26, 0
      %p263 = por %p261, %p262
      %s264 = ssub.s32 %s20, %s27
      %p265 = scmp.eq.s32.totalorder %s264, 0
      %s267 = sadd.s32 %s266, 1
      %s268 = scalar_select %p265, %s266, %s267
      %p271 = pneg %p265
      %p272 = scmp.eq.s32.totalorder %s20, 1
      %p273 = por %p271, %p272
      %p274 = scmp.ne.s32.totalorder %s266, %s269
      %p275 = scmp.eq.s32.totalorder %s20, 0
      %p276 = por %p274, %p275
      %p277 = scmp.ne.s32.totalorder %s266, %s269
      %p278 = scmp.eq.s32.totalorder %s25, 1
      %p279 = por %p277, %p278
      %p280 = scmp.ne.s32.totalorder %s269, %s270
      %p281 = scmp.eq.s32.totalorder %s25, 0
      %p282 = por %p280, %p281
      %p283 = scmp.ne.s32.totalorder %s269, %s270
      %p284 = scmp.eq.s32.totalorder %s26, 1
      %p285 = por %p283, %p284
      %p287 = scmp.ne.s32.totalorder %s270, %s286
      %p288 = scmp.eq.s32.totalorder %s26, 0
      %p289 = por %p287, %p288
      %s290 = ssub.s32 %s20, %s27
      %p291 = scmp.eq.s32.totalorder %s290, 0
      %s293 = sadd.s32 %s292, 1
      %s294 = scalar_select %p291, %s292, %s293
      %p297 = pneg %p291
      %p298 = scmp.eq.s32.totalorder %s20, 1
      %p299 = por %p297, %p298
      %p300 = scmp.ne.s32.totalorder %s292, %s295
      %p301 = scmp.eq.s32.totalorder %s20, 0
      %p302 = por %p300, %p301
      %p303 = scmp.ne.s32.totalorder %s292, %s295
      %p304 = scmp.eq.s32.totalorder %s25, 1
      %p305 = por %p303, %p304
      %p306 = scmp.ne.s32.totalorder %s295, %s296
      %p307 = scmp.eq.s32.totalorder %s25, 0
      %p308 = por %p306, %p307
      %p309 = scmp.ne.s32.totalorder %s295, %s296
      %p310 = scmp.eq.s32.totalorder %s26, 1
      %p311 = por %p309, %p310
      %p313 = scmp.ne.s32.totalorder %s296, %s312
      %p314 = scmp.eq.s32.totalorder %s26, 0
      %p315 = por %p313, %p314
      %s317 = sadd.s32 %s316, 1
      %p320 = scmp.eq.s32.totalorder %s20, 1
      %p321 = scmp.ne.s32.totalorder %s316, %s318
      %p322 = scmp.eq.s32.totalorder %s20, 0
      %p323 = por %p321, %p322
      %p324 = scmp.ne.s32.totalorder %s316, %s318
      %p325 = scmp.eq.s32.totalorder %s25, 1
      %p326 = por %p324, %p325
      %p327 = scmp.ne.s32.totalorder %s318, %s319
      %p328 = scmp.eq.s32.totalorder %s25, 0
      %p329 = por %p327, %p328
      %p330 = scmp.ne.s32.totalorder %s318, %s319
      %p331 = scmp.eq.s32.totalorder %s26, 1
      %p332 = por %p330, %p331
      %p334 = scmp.ne.s32.totalorder %s319, %s333
      %p335 = scmp.eq.s32.totalorder %s26, 0
      %p336 = por %p334, %p335
      %p337 = scmp.le.s32.totalorder 1, %s20
      %p338 = scmp.lt.s32.totalorder %s20, 3
      %p339 = pnand %p337, %p338
      %p340 = pneg %p339
      // Predicated region
      $region9: #{step.1} parent=5 // pred_check
        _
      $region10: #{step.1} parent=5 // pred_check_branch
        %342 = sbr.rel (%p339) target = $region12
      $region11: #{step.1} parent=5 // pred_region
        %s343 = ssub.s32 %s20, 1
        // Predicated region
        $region13: #{step.1} parent=11 // pred_check
          %p344 = pneg %p41
        $region14: #{step.1} parent=11 // pred_check_branch
          %346 = sbr.rel (%p344) target = $region16
        $region15: #{step.1} parent=11 // pred_region
          _
        $region16: #{step.1} parent=11 // pred_fallthru
          _
        // Predicated region
        $region17: #{step.1} parent=11 // pred_check
          %p347 = pneg %p62
        $region18: #{step.1} parent=11 // pred_check_branch
          %349 = sbr.rel (%p347) target = $region20
        $region19: #{step.1} parent=11 // pred_region
          _
        $region20: #{step.1} parent=11 // pred_fallthru
          _
        // Predicated region
        $region21: #{step.1} parent=11 // pred_check
          %p350 = pneg %p83
        $region22: #{step.1} parent=11 // pred_check_branch
          %352 = sbr.rel (%p350) target = $region24
        $region23: #{step.1} parent=11 // pred_region
          _
        $region24: #{step.1} parent=11 // pred_fallthru
          _
        // Predicated region
        $region25: #{step.1} parent=11 // pred_check
          %p353 = pneg %p104
        $region26: #{step.1} parent=11 // pred_check_branch
          %355 = sbr.rel (%p353) target = $region28
        $region27: #{step.1} parent=11 // pred_region
          _
        $region28: #{step.1} parent=11 // pred_fallthru
          _
        // Predicated region
        $region29: #{step.1} parent=11 // pred_check
          %p356 = pneg %p125
        $region30: #{step.1} parent=11 // pred_check_branch
          %358 = sbr.rel (%p356) target = $region32
        $region31: #{step.1} parent=11 // pred_region
          _
        $region32: #{step.1} parent=11 // pred_fallthru
          _
        // Predicated region
        $region33: #{step.1} parent=11 // pred_check
          %p359 = pneg %p146
        $region34: #{step.1} parent=11 // pred_check_branch
          %361 = sbr.rel (%p359) target = $region36
        $region35: #{step.1} parent=11 // pred_region
          _
        $region36: #{step.1} parent=11 // pred_fallthru
          _
        // Predicated region
        $region37: #{step.1} parent=11 // pred_check
          %p362 = pneg %p167
        $region38: #{step.1} parent=11 // pred_check_branch
          %364 = sbr.rel (%p362) target = $region40
        $region39: #{step.1} parent=11 // pred_region
          _
        $region40: #{step.1} parent=11 // pred_fallthru
          _
        // Predicated region
        $region41: #{step.1} parent=11 // pred_check
          %p365 = pneg %p188
        $region42: #{step.1} parent=11 // pred_check_branch
          %367 = sbr.rel (%p365) target = $region44
        $region43: #{step.1} parent=11 // pred_region
          _
        $region44: #{step.1} parent=11 // pred_fallthru
          _
        // Predicated region
        $region45: #{step.1} parent=11 // pred_check
          %p368 = pneg %p209
        $region46: #{step.1} parent=11 // pred_check_branch
          %370 = sbr.rel (%p368) target = $region48
        $region47: #{step.1} parent=11 // pred_region
          _
        $region48: #{step.1} parent=11 // pred_fallthru
          _
        // Predicated region
        $region49: #{step.1} parent=11 // pred_check
          %p371 = pneg %p230
        $region50: #{step.1} parent=11 // pred_check_branch
          %373 = sbr.rel (%p371) target = $region52
        $region51: #{step.1} parent=11 // pred_region
          _
        $region52: #{step.1} parent=11 // pred_fallthru
          _
      $region12: #{step.1} parent=5 // pred_fallthru
        _
      %p374 = scmp.lt.s32.totalorder %s20, 2
      // Predicated region
      $region53: #{step.1} parent=5 // pred_check
        %p375 = pneg %p374
      $region54: #{step.1} parent=5 // pred_check_branch
        %377 = sbr.rel (%p375) target = $region56
      $region55: #{step.1} parent=5 // pred_region
        // Predicated region
        $region57: #{step.1} parent=55 // pred_check
          %p378 = pneg %p250
        $region58: #{step.1} parent=55 // pred_check_branch
          %380 = sbr.rel (%p378) target = $region60
        $region59: #{step.1} parent=55 // pred_region
          %s381 = sand.u32 %s240, 1
          %s382 = sand.u32 %s240, 1
          %s383 = smul.addr %s382, 512
          %s384 = scalar_lea.vmem [#allocation3], %s383
          %s385 = smul.u32 2, %s20
          %s386 = smul.addr %s385, 4
          %s387 = scalar_lea.vmem %s10, %s386
          // Predicated region
          $region61: #{step.1} parent=59 // pred_check
            _
          $region62: #{step.1} parent=59 // pred_check_branch
            %389 = sbr.rel (0) target = $region64
          $region63: #{step.1} parent=59 // pred_region
            // Predicated region
            $region65: #{step.1} parent=63 // pred_check
              _
            $region66: #{step.1} parent=63 // pred_check_branch
              %391 = sbr.rel (0) target = $region68
            $region67: #{step.1} parent=63 // pred_region
              // Predicated region
              $region80: #{step.1} parent=67 // pred_check
                _
              $region81: #{step.1} parent=67 // pred_check_branch
                %532 = sbr.rel (0) target = $region83
              $region82: #{step.1} parent=67 // pred_region
                loop: start=0, step=1, limit=1
                $region84: #{step.1} parent=82 // loop_pre_header
                  _
                $region85: #{step.1} parent=82 // loop_header
                  %s534 = sphi 0, %s538
                  %p535 = scmp.ge.s32.totalorder %s534, 1
                  %s539 = sphi %s387, %s387
                  %s540 = sphi %s384, %s384
                $region86: #{step.1} parent=82 // loop_header_branch
                  %537 = sbr.rel (%p535) target = $region90
                $region87: #{step.1} parent=82 // loop_body
                  %v541 = vld [vmem:[%s539] sm:$0xff]
                  %542 = vst [vmem:[%s540] sm:$0xff] %v541
                  %v543 = vld [vmem:[%s539 + $0x10] sm:$0xff]
                  %544 = vst [vmem:[%s540 + $0x8] sm:$0xff] %v543
                  %v545 = vld [vmem:[%s539 + $0x20] sm:$0xff]
                  %546 = vst [vmem:[%s540 + $0x10] sm:$0xff] %v545
                  %v547 = vld [vmem:[%s539 + $0x30] sm:$0xff]
                  %548 = vst [vmem:[%s540 + $0x18] sm:$0xff] %v547
                  %v549 = vld [vmem:[%s539 + $0x40] sm:$0xff]
                  %550 = vst [vmem:[%s540 + $0x20] sm:$0xff] %v549
                  %v551 = vld [vmem:[%s539 + $0x50] sm:$0xff]
                  %552 = vst [vmem:[%s540 + $0x28] sm:$0xff] %v551
                  %v553 = vld [vmem:[%s539 + $0x60] sm:$0xff]
                  %554 = vst [vmem:[%s540 + $0x30] sm:$0xff] %v553
                  %v555 = vld [vmem:[%s539 + $0x70] sm:$0xff]
                  %556 = vst [vmem:[%s540 + $0x38] sm:$0xff] %v555
                  %v557 = vld [vmem:[%s539 + $0x80] sm:$0xff]
                  %558 = vst [vmem:[%s540 + $0x40] sm:$0xff] %v557
                  %v559 = vld [vmem:[%s539 + $0x90] sm:$0xff]
                  %560 = vst [vmem:[%s540 + $0x48] sm:$0xff] %v559
                  %v561 = vld [vmem:[%s539 + $0xa0] sm:$0xff]
                  %562 = vst [vmem:[%s540 + $0x50] sm:$0xff] %v561
                  %v563 = vld [vmem:[%s539 + $0xb0] sm:$0xff]
                  %564 = vst [vmem:[%s540 + $0x58] sm:$0xff] %v563
                  %v565 = vld [vmem:[%s539 + $0xc0] sm:$0xff]
                  %566 = vst [vmem:[%s540 + $0x60] sm:$0xff] %v565
                  %v567 = vld [vmem:[%s539 + $0xd0] sm:$0xff]
                  %568 = vst [vmem:[%s540 + $0x68] sm:$0xff] %v567
                  %v569 = vld [vmem:[%s539 + $0xe0] sm:$0xff]
                  %570 = vst [vmem:[%s540 + $0x70] sm:$0xff] %v569
                  %v571 = vld [vmem:[%s539 + $0xf0] sm:$0xff]
                  %572 = vst [vmem:[%s540 + $0x78] sm:$0xff] %v571
                  %v573 = vld [vmem:[%s539 + $0x100] sm:$0xff]
                  %574 = vst [vmem:[%s540 + $0x80] sm:$0xff] %v573
                  %v575 = vld [vmem:[%s539 + $0x110] sm:$0xff]
                  %576 = vst [vmem:[%s540 + $0x88] sm:$0xff] %v575
                  %v577 = vld [vmem:[%s539 + $0x120] sm:$0xff]
                  %578 = vst [vmem:[%s540 + $0x90] sm:$0xff] %v577
                  %v579 = vld [vmem:[%s539 + $0x130] sm:$0xff]
                  %580 = vst [vmem:[%s540 + $0x98] sm:$0xff] %v579
                  %v581 = vld [vmem:[%s539 + $0x140] sm:$0xff]
                  %582 = vst [vmem:[%s540 + $0xa0] sm:$0xff] %v581
                  %v583 = vld [vmem:[%s539 + $0x150] sm:$0xff]
                  %584 = vst [vmem:[%s540 + $0xa8] sm:$0xff] %v583
                  %v585 = vld [vmem:[%s539 + $0x160] sm:$0xff]
                  %586 = vst [vmem:[%s540 + $0xb0] sm:$0xff] %v585
                  %v587 = vld [vmem:[%s539 + $0x170] sm:$0xff]
                  %588 = vst [vmem:[%s540 + $0xb8] sm:$0xff] %v587
                  %v589 = vld [vmem:[%s539 + $0x180] sm:$0xff]
                  %590 = vst [vmem:[%s540 + $0xc0] sm:$0xff] %v589
                  %v591 = vld [vmem:[%s539 + $0x190] sm:$0xff]
                  %592 = vst [vmem:[%s540 + $0xc8] sm:$0xff] %v591
                  %v593 = vld [vmem:[%s539 + $0x1a0] sm:$0xff]
                  %594 = vst [vmem:[%s540 + $0xd0] sm:$0xff] %v593
                  %v595 = vld [vmem:[%s539 + $0x1b0] sm:$0xff]
                  %596 = vst [vmem:[%s540 + $0xd8] sm:$0xff] %v595
                  %v597 = vld [vmem:[%s539 + $0x1c0] sm:$0xff]
                  %598 = vst [vmem:[%s540 + $0xe0] sm:$0xff] %v597
                  %v599 = vld [vmem:[%s539 + $0x1d0] sm:$0xff]
                  %600 = vst [vmem:[%s540 + $0xe8] sm:$0xff] %v599
                  %v601 = vld [vmem:[%s539 + $0x1e0] sm:$0xff]
                  %602 = vst [vmem:[%s540 + $0xf0] sm:$0xff] %v601
                  %v603 = vld [vmem:[%s539 + $0x1f0] sm:$0xff]
                  %604 = vst [vmem:[%s540 + $0xf8] sm:$0xff] %v603
                  %v605 = vld [vmem:[%s539 + $0x200] sm:$0xff]
                  %606 = vst [vmem:[%s540 + $0x100] sm:$0xff] %v605
                  %v607 = vld [vmem:[%s539 + $0x210] sm:$0xff]
                  %608 = vst [vmem:[%s540 + $0x108] sm:$0xff] %v607
                  %v609 = vld [vmem:[%s539 + $0x220] sm:$0xff]
                  %610 = vst [vmem:[%s540 + $0x110] sm:$0xff] %v609
                  %v611 = vld [vmem:[%s539 + $0x230] sm:$0xff]
                  %612 = vst [vmem:[%s540 + $0x118] sm:$0xff] %v611
                  %v613 = vld [vmem:[%s539 + $0x240] sm:$0xff]
                  %614 = vst [vmem:[%s540 + $0x120] sm:$0xff] %v613
                  %v615 = vld [vmem:[%s539 + $0x250] sm:$0xff]
                  %616 = vst [vmem:[%s540 + $0x128] sm:$0xff] %v615
                  %v617 = vld [vmem:[%s539 + $0x260] sm:$0xff]
                  %618 = vst [vmem:[%s540 + $0x130] sm:$0xff] %v617
                  %v619 = vld [vmem:[%s539 + $0x270] sm:$0xff]
                  %620 = vst [vmem:[%s540 + $0x138] sm:$0xff] %v619
                  %v621 = vld [vmem:[%s539 + $0x280] sm:$0xff]
                  %622 = vst [vmem:[%s540 + $0x140] sm:$0xff] %v621
                  %v623 = vld [vmem:[%s539 + $0x290] sm:$0xff]
                  %624 = vst [vmem:[%s540 + $0x148] sm:$0xff] %v623
                  %v625 = vld [vmem:[%s539 + $0x2a0] sm:$0xff]
                  %626 = vst [vmem:[%s540 + $0x150] sm:$0xff] %v625
                  %v627 = vld [vmem:[%s539 + $0x2b0] sm:$0xff]
                  %628 = vst [vmem:[%s540 + $0x158] sm:$0xff] %v627
                  %v629 = vld [vmem:[%s539 + $0x2c0] sm:$0xff]
                  %630 = vst [vmem:[%s540 + $0x160] sm:$0xff] %v629
                  %v631 = vld [vmem:[%s539 + $0x2d0] sm:$0xff]
                  %632 = vst [vmem:[%s540 + $0x168] sm:$0xff] %v631
                  %v633 = vld [vmem:[%s539 + $0x2e0] sm:$0xff]
                  %634 = vst [vmem:[%s540 + $0x170] sm:$0xff] %v633
                  %v635 = vld [vmem:[%s539 + $0x2f0] sm:$0xff]
                  %636 = vst [vmem:[%s540 + $0x178] sm:$0xff] %v635
                  %v637 = vld [vmem:[%s539 + $0x300] sm:$0xff]
                  %638 = vst [vmem:[%s540 + $0x180] sm:$0xff] %v637
                  %v639 = vld [vmem:[%s539 + $0x310] sm:$0xff]
                  %640 = vst [vmem:[%s540 + $0x188] sm:$0xff] %v639
                  %v641 = vld [vmem:[%s539 + $0x320] sm:$0xff]
                  %642 = vst [vmem:[%s540 + $0x190] sm:$0xff] %v641
                  %v643 = vld [vmem:[%s539 + $0x330] sm:$0xff]
                  %644 = vst [vmem:[%s540 + $0x198] sm:$0xff] %v643
                  %v645 = vld [vmem:[%s539 + $0x340] sm:$0xff]
                  %646 = vst [vmem:[%s540 + $0x1a0] sm:$0xff] %v645
                  %v647 = vld [vmem:[%s539 + $0x350] sm:$0xff]
                  %648 = vst [vmem:[%s540 + $0x1a8] sm:$0xff] %v647
                  %v649 = vld [vmem:[%s539 + $0x360] sm:$0xff]
                  %650 = vst [vmem:[%s540 + $0x1b0] sm:$0xff] %v649
                  %v651 = vld [vmem:[%s539 + $0x370] sm:$0xff]
                  %652 = vst [vmem:[%s540 + $0x1b8] sm:$0xff] %v651
                  %v653 = vld [vmem:[%s539 + $0x380] sm:$0xff]
                  %654 = vst [vmem:[%s540 + $0x1c0] sm:$0xff] %v653
                  %v655 = vld [vmem:[%s539 + $0x390] sm:$0xff]
                  %656 = vst [vmem:[%s540 + $0x1c8] sm:$0xff] %v655
                  %v657 = vld [vmem:[%s539 + $0x3a0] sm:$0xff]
                  %658 = vst [vmem:[%s540 + $0x1d0] sm:$0xff] %v657
                  %v659 = vld [vmem:[%s539 + $0x3b0] sm:$0xff]
                  %660 = vst [vmem:[%s540 + $0x1d8] sm:$0xff] %v659
                  %v661 = vld [vmem:[%s539 + $0x3c0] sm:$0xff]
                  %662 = vst [vmem:[%s540 + $0x1e0] sm:$0xff] %v661
                  %v663 = vld [vmem:[%s539 + $0x3d0] sm:$0xff]
                  %664 = vst [vmem:[%s540 + $0x1e8] sm:$0xff] %v663
                  %v665 = vld [vmem:[%s539 + $0x3e0] sm:$0xff]
                  %666 = vst [vmem:[%s540 + $0x1f0] sm:$0xff] %v665
                  %v667 = vld [vmem:[%s539 + $0x3f0] sm:$0xff]
                  %668 = vst [vmem:[%s540 + $0x1f8] sm:$0xff] %v667
                $region88: #{step.1} parent=82 // loop_footer
                  %s538 = sadd.s32 1, %s534
                $region89: #{step.1} parent=82 // loop_footer_branch
                  %533 = sbr.rel target = $region85
                $region90: #{step.1} parent=82 // loop_exit
                  _
              $region83: #{step.1} parent=67 // pred_fallthru
                _
              // Predicated region
              $region91: #{step.1} parent=67 // pred_check
                _
              $region92: #{step.1} parent=67 // pred_check_branch
                %670 = sbr.rel target = $region94
              $region93: #{step.1} parent=67 // pred_region
                _
              $region94: #{step.1} parent=67 // pred_fallthru
                _
            $region68: #{step.1} parent=63 // pred_fallthru
              _
            // Predicated region
            $region69: #{step.1} parent=63 // pred_check
              _
            $region70: #{step.1} parent=63 // pred_check_branch
              %393 = sbr.rel target = $region72
            $region71: #{step.1} parent=63 // pred_region
              loop: start=0, step=1, limit=1
              $region73: #{step.1} parent=71 // loop_pre_header
                _
              $region74: #{step.1} parent=71 // loop_header
                %s396 = sphi 0, %s400
                %p397 = scmp.ge.s32.totalorder %s396, 1
                %s401 = sphi %s387, %s387
                %s402 = sphi %s384, %s384
              $region75: #{step.1} parent=71 // loop_header_branch
                %399 = sbr.rel (%p397) target = $region79
              $region76: #{step.1} parent=71 // loop_body
                %v403 = vld [vmem:[%s401] sm:$0xff]
                %404 = vst [vmem:[%s402] sm:$0xff] %v403
                %v405 = vld [vmem:[%s401 + $0x10] sm:$0xff]
                %406 = vst [vmem:[%s402 + $0x8] sm:$0xff] %v405
                %v407 = vld [vmem:[%s401 + $0x20] sm:$0xff]
                %408 = vst [vmem:[%s402 + $0x10] sm:$0xff] %v407
                %v409 = vld [vmem:[%s401 + $0x30] sm:$0xff]
                %410 = vst [vmem:[%s402 + $0x18] sm:$0xff] %v409
                %v411 = vld [vmem:[%s401 + $0x40] sm:$0xff]
                %412 = vst [vmem:[%s402 + $0x20] sm:$0xff] %v411
                %v413 = vld [vmem:[%s401 + $0x50] sm:$0xff]
                %414 = vst [vmem:[%s402 + $0x28] sm:$0xff] %v413
                %v415 = vld [vmem:[%s401 + $0x60] sm:$0xff]
                %416 = vst [vmem:[%s402 + $0x30] sm:$0xff] %v415
                %v417 = vld [vmem:[%s401 + $0x70] sm:$0xff]
                %418 = vst [vmem:[%s402 + $0x38] sm:$0xff] %v417
                %v419 = vld [vmem:[%s401 + $0x80] sm:$0xff]
                %420 = vst [vmem:[%s402 + $0x40] sm:$0xff] %v419
                %v421 = vld [vmem:[%s401 + $0x90] sm:$0xff]
                %422 = vst [vmem:[%s402 + $0x48] sm:$0xff] %v421
                %v423 = vld [vmem:[%s401 + $0xa0] sm:$0xff]
                %424 = vst [vmem:[%s402 + $0x50] sm:$0xff] %v423
                %v425 = vld [vmem:[%s401 + $0xb0] sm:$0xff]
                %426 = vst [vmem:[%s402 + $0x58] sm:$0xff] %v425
                %v427 = vld [vmem:[%s401 + $0xc0] sm:$0xff]
                %428 = vst [vmem:[%s402 + $0x60] sm:$0xff] %v427
                %v429 = vld [vmem:[%s401 + $0xd0] sm:$0xff]
                %430 = vst [vmem:[%s402 + $0x68] sm:$0xff] %v429
                %v431 = vld [vmem:[%s401 + $0xe0] sm:$0xff]
                %432 = vst [vmem:[%s402 + $0x70] sm:$0xff] %v431
                %v433 = vld [vmem:[%s401 + $0xf0] sm:$0xff]
                %434 = vst [vmem:[%s402 + $0x78] sm:$0xff] %v433
                %v435 = vld [vmem:[%s401 + $0x100] sm:$0xff]
                %436 = vst [vmem:[%s402 + $0x80] sm:$0xff] %v435
                %v437 = vld [vmem:[%s401 + $0x110] sm:$0xff]
                %438 = vst [vmem:[%s402 + $0x88] sm:$0xff] %v437
                %v439 = vld [vmem:[%s401 + $0x120] sm:$0xff]
                %440 = vst [vmem:[%s402 + $0x90] sm:$0xff] %v439
                %v441 = vld [vmem:[%s401 + $0x130] sm:$0xff]
                %442 = vst [vmem:[%s402 + $0x98] sm:$0xff] %v441
                %v443 = vld [vmem:[%s401 + $0x140] sm:$0xff]
                %444 = vst [vmem:[%s402 + $0xa0] sm:$0xff] %v443
                %v445 = vld [vmem:[%s401 + $0x150] sm:$0xff]
                %446 = vst [vmem:[%s402 + $0xa8] sm:$0xff] %v445
                %v447 = vld [vmem:[%s401 + $0x160] sm:$0xff]
                %448 = vst [vmem:[%s402 + $0xb0] sm:$0xff] %v447
                %v449 = vld [vmem:[%s401 + $0x170] sm:$0xff]
                %450 = vst [vmem:[%s402 + $0xb8] sm:$0xff] %v449
                %v451 = vld [vmem:[%s401 + $0x180] sm:$0xff]
                %452 = vst [vmem:[%s402 + $0xc0] sm:$0xff] %v451
                %v453 = vld [vmem:[%s401 + $0x190] sm:$0xff]
                %454 = vst [vmem:[%s402 + $0xc8] sm:$0xff] %v453
                %v455 = vld [vmem:[%s401 + $0x1a0] sm:$0xff]
                %456 = vst [vmem:[%s402 + $0xd0] sm:$0xff] %v455
                %v457 = vld [vmem:[%s401 + $0x1b0] sm:$0xff]
                %458 = vst [vmem:[%s402 + $0xd8] sm:$0xff] %v457
                %v459 = vld [vmem:[%s401 + $0x1c0] sm:$0xff]
                %460 = vst [vmem:[%s402 + $0xe0] sm:$0xff] %v459
                %v461 = vld [vmem:[%s401 + $0x1d0] sm:$0xff]
                %462 = vst [vmem:[%s402 + $0xe8] sm:$0xff] %v461
                %v463 = vld [vmem:[%s401 + $0x1e0] sm:$0xff]
                %464 = vst [vmem:[%s402 + $0xf0] sm:$0xff] %v463
                %v465 = vld [vmem:[%s401 + $0x1f0] sm:$0xff]
                %466 = vst [vmem:[%s402 + $0xf8] sm:$0xff] %v465
                %v467 = vld [vmem:[%s401 + $0x200] sm:$0xff]
                %468 = vst [vmem:[%s402 + $0x100] sm:$0xff] %v467
                %v469 = vld [vmem:[%s401 + $0x210] sm:$0xff]
                %470 = vst [vmem:[%s402 + $0x108] sm:$0xff] %v469
                %v471 = vld [vmem:[%s401 + $0x220] sm:$0xff]
                %472 = vst [vmem:[%s402 + $0x110] sm:$0xff] %v471
                %v473 = vld [vmem:[%s401 + $0x230] sm:$0xff]
                %474 = vst [vmem:[%s402 + $0x118] sm:$0xff] %v473
                %v475 = vld [vmem:[%s401 + $0x240] sm:$0xff]
                %476 = vst [vmem:[%s402 + $0x120] sm:$0xff] %v475
                %v477 = vld [vmem:[%s401 + $0x250] sm:$0xff]
                %478 = vst [vmem:[%s402 + $0x128] sm:$0xff] %v477
                %v479 = vld [vmem:[%s401 + $0x260] sm:$0xff]
                %480 = vst [vmem:[%s402 + $0x130] sm:$0xff] %v479
                %v481 = vld [vmem:[%s401 + $0x270] sm:$0xff]
                %482 = vst [vmem:[%s402 + $0x138] sm:$0xff] %v481
                %v483 = vld [vmem:[%s401 + $0x280] sm:$0xff]
                %484 = vst [vmem:[%s402 + $0x140] sm:$0xff] %v483
                %v485 = vld [vmem:[%s401 + $0x290] sm:$0xff]
                %486 = vst [vmem:[%s402 + $0x148] sm:$0xff] %v485
                %v487 = vld [vmem:[%s401 + $0x2a0] sm:$0xff]
                %488 = vst [vmem:[%s402 + $0x150] sm:$0xff] %v487
                %v489 = vld [vmem:[%s401 + $0x2b0] sm:$0xff]
                %490 = vst [vmem:[%s402 + $0x158] sm:$0xff] %v489
                %v491 = vld [vmem:[%s401 + $0x2c0] sm:$0xff]
                %492 = vst [vmem:[%s402 + $0x160] sm:$0xff] %v491
                %v493 = vld [vmem:[%s401 + $0x2d0] sm:$0xff]
                %494 = vst [vmem:[%s402 + $0x168] sm:$0xff] %v493
                %v495 = vld [vmem:[%s401 + $0x2e0] sm:$0xff]
                %496 = vst [vmem:[%s402 + $0x170] sm:$0xff] %v495
                %v497 = vld [vmem:[%s401 + $0x2f0] sm:$0xff]
                %498 = vst [vmem:[%s402 + $0x178] sm:$0xff] %v497
                %v499 = vld [vmem:[%s401 + $0x300] sm:$0xff]
                %500 = vst [vmem:[%s402 + $0x180] sm:$0xff] %v499
                %v501 = vld [vmem:[%s401 + $0x310] sm:$0xff]
                %502 = vst [vmem:[%s402 + $0x188] sm:$0xff] %v501
                %v503 = vld [vmem:[%s401 + $0x320] sm:$0xff]
                %504 = vst [vmem:[%s402 + $0x190] sm:$0xff] %v503
                %v505 = vld [vmem:[%s401 + $0x330] sm:$0xff]
                %506 = vst [vmem:[%s402 + $0x198] sm:$0xff] %v505
                %v507 = vld [vmem:[%s401 + $0x340] sm:$0xff]
                %508 = vst [vmem:[%s402 + $0x1a0] sm:$0xff] %v507
                %v509 = vld [vmem:[%s401 + $0x350] sm:$0xff]
                %510 = vst [vmem:[%s402 + $0x1a8] sm:$0xff] %v509
                %v511 = vld [vmem:[%s401 + $0x360] sm:$0xff]
                %512 = vst [vmem:[%s402 + $0x1b0] sm:$0xff] %v511
                %v513 = vld [vmem:[%s401 + $0x370] sm:$0xff]
                %514 = vst [vmem:[%s402 + $0x1b8] sm:$0xff] %v513
                %v515 = vld [vmem:[%s401 + $0x380] sm:$0xff]
                %516 = vst [vmem:[%s402 + $0x1c0] sm:$0xff] %v515
                %v517 = vld [vmem:[%s401 + $0x390] sm:$0xff]
                %518 = vst [vmem:[%s402 + $0x1c8] sm:$0xff] %v517
                %v519 = vld [vmem:[%s401 + $0x3a0] sm:$0xff]
                %520 = vst [vmem:[%s402 + $0x1d0] sm:$0xff] %v519
                %v521 = vld [vmem:[%s401 + $0x3b0] sm:$0xff]
                %522 = vst [vmem:[%s402 + $0x1d8] sm:$0xff] %v521
                %v523 = vld [vmem:[%s401 + $0x3c0] sm:$0xff]
                %524 = vst [vmem:[%s402 + $0x1e0] sm:$0xff] %v523
                %v525 = vld [vmem:[%s401 + $0x3d0] sm:$0xff]
                %526 = vst [vmem:[%s402 + $0x1e8] sm:$0xff] %v525
                %v527 = vld [vmem:[%s401 + $0x3e0] sm:$0xff]
                %528 = vst [vmem:[%s402 + $0x1f0] sm:$0xff] %v527
                %v529 = vld [vmem:[%s401 + $0x3f0] sm:$0xff]
                %530 = vst [vmem:[%s402 + $0x1f8] sm:$0xff] %v529
              $region77: #{step.1} parent=71 // loop_footer
                %s400 = sadd.s32 1, %s396
              $region78: #{step.1} parent=71 // loop_footer_branch
                %395 = sbr.rel target = $region74
              $region79: #{step.1} parent=71 // loop_exit
                _
            $region72: #{step.1} parent=63 // pred_fallthru
              _
          $region64: #{step.1} parent=59 // pred_fallthru
            _
          %671 = vnop
        $region60: #{step.1} parent=55 // pred_fallthru
          _
        // Predicated region
        $region95: #{step.1} parent=55 // pred_check
          %p672 = pneg %p276
        $region96: #{step.1} parent=55 // pred_check_branch
          %674 = sbr.rel (%p672) target = $region98
        $region97: #{step.1} parent=55 // pred_region
          %s675 = smul.u32 2, %s20
          %p676 = scmp.lt.s32.totalorder %s675, 3
          %s677 = scalar_select %p676, %s675, 3
          %s678 = scalar_lea.vmem %s11, %s677
          %s679 = smul.u32 2, %s20
        $region98: #{step.1} parent=55 // pred_fallthru
          _
      $region56: #{step.1} parent=5 // pred_fallthru
        _
      %p680 = scmp.le.s32.totalorder 1, %s20
      %p681 = scmp.lt.s32.totalorder %s20, 3
      %p682 = pnand %p680, %p681
      %p683 = pneg %p682
      // Predicated region
      $region99: #{step.1} parent=5 // pred_check
        _
      $region100: #{step.1} parent=5 // pred_check_branch
        %685 = sbr.rel (%p682) target = $region102
      $region101: #{step.1} parent=5 // pred_region
        %s686 = ssub.s32 %s20, 1
        %s687 = sand.u32 %s243, 1
        %s688 = sand.u32 %s243, 1
        %s689 = smul.addr %s688, 512
        %s690 = scalar_lea.vmem [#allocation3], %s689
        // Predicated region
        $region103: #{step.1} parent=101 // pred_check
          %p691 = pneg %p256
        $region104: #{step.1} parent=101 // pred_check_branch
          %693 = sbr.rel (%p691) target = $region106
        $region105: #{step.1} parent=101 // pred_region
          _
        $region106: #{step.1} parent=101 // pred_fallthru
          _
        %p694 = pneg %p41
        %p695 = pneg %p38
        %p696 = pneg %p62
        %p697 = pneg %p59
        %p698 = pneg %p83
        %p699 = pneg %p80
        %p700 = pneg %p104
        %p701 = pneg %p101
        %p702 = pneg %p125
        %p703 = pneg %p122
        %p704 = pneg %p146
        %p705 = pneg %p143
        %p706 = pneg %p167
        %p707 = pneg %p164
        %p708 = pneg %p188
        %p709 = pneg %p185
        %p710 = pneg %p209
        %p711 = pneg %p206
        %p712 = pneg %p230
        %p713 = pneg %p227
        %s714 = sand.u32 %s243, 1
        %s715 = sand.u32 %s243, 1
        %s716 = smul.addr %s715, 512
        %s717 = scalar_lea.vmem [#allocation3], %s716
        %p718 = pneg %p256
        %p719 = pneg %p253
        %s720 = smul.u32 2, %s25
        %p721 = scmp.lt.s32.totalorder %s720, 3
        %s722 = scalar_select %p721, %s720, 3
        %s723 = scalar_lea.vmem %s11, %s722
        %p724 = pneg %p282
        %p725 = pneg %p279
        %p726 = pneg %p308
        %p727 = pneg %p305
        %s728 = smul.u32 2, %s25
        %p729 = scmp.lt.s32.totalorder %s728, 3
        %s730 = scalar_select %p729, %s728, 3
        %s731 = smul.addr %s730, 8
        %s732 = scalar_lea.vmem %s12, %s731
        %p733 = pneg %p329
        %p734 = pneg %p326
        %s735 = smul.u32 2, %s25
        %s736 = smul.u32 2, %s25
        %p737 = scmp.lt.s32.totalorder %s736, 3
        %s738 = scalar_select %p737, %s736, 3
        %s739 = scalar_lea.vmem %s11, %s738
        %s740 = smul.u32 2, %s25
        %s741 = smul.u32 2, %s25
        %p742 = scmp.lt.s32.totalorder %s741, 3
        %s743 = scalar_select %p742, %s741, 3
        %s744 = smul.addr %s743, 8
        %s745 = scalar_lea.vmem %s12, %s744
        %s746 = smul.u32 2, %s25
        %p748 = scmp.eq.s32.totalorder %s25, 0
        // Predicated region
        $region107: #{step.1} parent=101 // pred_check
          %p749 = pneg %p748
        $region108: #{step.1} parent=101 // pred_check_branch
          %751 = sbr.rel (%p749) target = $region110
        $region109: #{step.1} parent=101 // pred_region
          %v752 = vld [vmem:[%s0] sm:$0xff]
          %v753 = vld [vmem:[%s1] sm:$0xff]
          %v754 = vld [vmem:[%s2] sm:$0xff]
          %v755 = vld [vmem:[%s2 + $0x8] sm:$0xff]
          %v756 = vld [vmem:[%s2 + $0x10] sm:$0xff]
          %v757 = vld [vmem:[%s2 + $0x18] sm:$0xff]
          %v758 = vld [vmem:[%s2 + $0x20] sm:$0xff]
          %v759 = vld [vmem:[%s2 + $0x28] sm:$0xff]
          %v760 = vld [vmem:[%s2 + $0x30] sm:$0xff]
          %v761 = vld [vmem:[%s2 + $0x38] sm:$0xff]
          %v762 = vld [vmem:[%s2 + $0x40] sm:$0xff]
          %v763 = vld [vmem:[%s2 + $0x48] sm:$0xff]
          %v764 = vld [vmem:[%s2 + $0x50] sm:$0xff]
          %v765 = vld [vmem:[%s2 + $0x58] sm:$0xff]
          %v766 = vld [vmem:[%s2 + $0x60] sm:$0xff]
          %v767 = vld [vmem:[%s2 + $0x68] sm:$0xff]
          %v768 = vld [vmem:[%s2 + $0x70] sm:$0xff]
          %v769 = vld [vmem:[%s2 + $0x78] sm:$0xff]
          %v770 = vld [vmem:[%s3] sm:$0xff]
          %v771 = vld [vmem:[%s3 + $0x8] sm:$0xff]
          %v772 = vld [vmem:[%s3 + $0x10] sm:$0xff]
          %v773 = vld [vmem:[%s3 + $0x18] sm:$0xff]
          %v774 = vld [vmem:[%s3 + $0x20] sm:$0xff]
          %v775 = vld [vmem:[%s3 + $0x28] sm:$0xff]
          %v776 = vld [vmem:[%s3 + $0x30] sm:$0xff]
          %v777 = vld [vmem:[%s3 + $0x38] sm:$0xff]
          %v778 = vpack.c.bf16 %v753, %v753
          %v779 = vld [vmem:[%s4] sm:$0xf]
          %v780 = vld [vmem:[%s4 + $0x4] sm:$0xf]
          %v781 = vld [vmem:[%s4 + $0x8] sm:$0xf]
          %v782 = vld [vmem:[%s4 + $0xc] sm:$0xf]
          %v783 = vld [vmem:[%s4 + $0x10] sm:$0xf]
          %v784 = vld [vmem:[%s4 + $0x14] sm:$0xf]
          %v785 = vld [vmem:[%s4 + $0x18] sm:$0xf]
          %v786 = vld [vmem:[%s4 + $0x1c] sm:$0xf]
          %v787 = vld [vmem:[%s4 + $0x20] sm:$0xf]
          %v788 = vld [vmem:[%s4 + $0x24] sm:$0xf]
          %v789 = vld [vmem:[%s4 + $0x28] sm:$0xf]
          %v790 = vld [vmem:[%s4 + $0x2c] sm:$0xf]
          %v791 = vld [vmem:[%s4 + $0x30] sm:$0xf]
          %v792 = vld [vmem:[%s4 + $0x34] sm:$0xf]
          %v793 = vld [vmem:[%s4 + $0x38] sm:$0xf]
          %v794 = vld [vmem:[%s4 + $0x3c] sm:$0xf]
          %v811 = vunpack.c.l.b16 %v779
          %v812 = vunpack.c.l.b16 %v780
          %v813 = vunpack.c.l.b16 %v781
          %v814 = vunpack.c.l.b16 %v782
          %v815 = vunpack.c.l.b16 %v783
          %v816 = vunpack.c.l.b16 %v784
          %v817 = vunpack.c.l.b16 %v785
          %v818 = vunpack.c.l.b16 %v786
          %v819 = vunpack.c.l.b16 %v787
          %v820 = vunpack.c.l.b16 %v788
          %v821 = vunpack.c.l.b16 %v789
          %v822 = vunpack.c.l.b16 %v790
          %v823 = vunpack.c.l.b16 %v791
          %v824 = vunpack.c.l.b16 %v792
          %v825 = vunpack.c.l.b16 %v793
          %v826 = vunpack.c.l.b16 %v794
          %v827 = vpack.c.b16 %v812, %v811
          %v828 = vpack.c.b16 %v814, %v813
          %v829 = vpack.c.b16 %v816, %v815
          %v830 = vpack.c.b16 %v818, %v817
          %v831 = vpack.c.b16 %v820, %v819
          %v832 = vpack.c.b16 %v822, %v821
          %v833 = vpack.c.b16 %v824, %v823
          %v834 = vpack.c.b16 %v826, %v825
          %843 = vmatprep.subr.bf16.mxu0 0
          %844 = vmatpush1.bf16.msra.mxu0 %v827
          %845 = vmatprep.subr.bf16.mxu0 0
          %846 = vmatpush1.bf16.msra.mxu0 %v828
          %847 = vmatprep.subr.bf16.mxu0 0
          %848 = vmatpush1.bf16.msra.mxu0 %v829
          %849 = vmatprep.subr.bf16.mxu0 0
          %850 = vmatpush1.bf16.msra.mxu0 %v830
          %851 = vmatprep.subr.bf16.mxu0 0
          %852 = vmatpush1.bf16.msra.mxu0 %v831
          %853 = vmatprep.subr.bf16.mxu0 0
          %854 = vmatpush1.bf16.msra.mxu0 %v832
          %855 = vmatprep.subr.bf16.mxu0 0
          %856 = vmatpush1.bf16.msra.mxu0 %v833
          %857 = vmatprep.subr.bf16.mxu0 0
          %858 = vmatpush1.bf16.msra.mxu0 %v834
          %859 = vmatprep.subr.bf16.mxu0 0
          %860 = vmatpush1.bf16.msra.mxu0 0
          %861 = vmatprep.subr.bf16.mxu0 0
          %862 = vmatpush1.bf16.msra.mxu0 0
          %863 = vmatprep.subr.bf16.mxu0 0
          %864 = vmatpush1.bf16.msra.mxu0 0
          %865 = vmatprep.subr.bf16.mxu0 0
          %866 = vmatpush1.bf16.msra.mxu0 0
          %867 = vmatprep.subr.bf16.mxu0 0
          %868 = vmatpush1.bf16.msra.mxu0 0
          %869 = vmatprep.subr.bf16.mxu0 0
          %870 = vmatpush1.bf16.msra.mxu0 0
          %871 = vmatprep.subr.bf16.mxu0 0
          %872 = vmatpush1.bf16.msra.mxu0 0
          %873 = vmatprep.subr.bf16.mxu0 0
          %874 = vmatpush1.bf16.msra.mxu0 0
          %875 = vmatprep.mubr.bf16.mxu0 0
          %876 = vmatmul.mubr.bf16.gmra.mrb[0].mxu0 %v778
          %v877 = vpop.f32.mrb[0].mxu0
          %v878 = vadd.f32 0.0, %v877
          %v879 = vpop.f32.mrb[0].mxu0
          %v880 = vpop.f32.mrb[0].mxu0
          %v881 = vpop.f32.mrb[0].mxu0
          %882 = vdwg.mxu0
          %v884 = vcombine.high %v878, %v878
          %v886 = vunpack.c.l.s4 1966171168
          %v887 = vunpack.c.0.s8 %v886
          %v888 = vlaneseq
          %v889 = vshrl.u32 %v888, 7
          %v890 = vsub.s32 %v887, %v889
          %v891 = vrot.slane %v878, %v890
          %v893 = vunpack.c.l.s4 1966171168
          %v894 = vunpack.c.0.s8 %v893
          %v895 = vlaneseq
          %v896 = vshrl.u32 %v895, 7
          %v897 = vsub.s32 %v894, %v896
          %v898 = vrot.slane %v884, %v897
          %v899 = vcombine.high %v891, %v891
          %v900 = vcombine.high %v898, %v898
          %v902 = vunpack.c.l.s4 1966171168
          %v903 = vunpack.c.0.s8 %v902
          %v904 = vlaneseq
          %v905 = vshrl.u32 %v904, 7
          %v906 = vsub.s32 %v903, %v905
          %v907 = vrot.slane %v891, %v906
          %v909 = vunpack.c.l.s4 1966171168
          %v910 = vunpack.c.0.s8 %v909
          %v911 = vlaneseq
          %v912 = vshrl.u32 %v911, 7
          %v913 = vsub.s32 %v910, %v912
          %v914 = vrot.slane %v898, %v913
          %v916 = vunpack.c.l.s4 1966171168
          %v917 = vunpack.c.0.s8 %v916
          %v918 = vlaneseq
          %v919 = vshrl.u32 %v918, 7
          %v920 = vsub.s32 %v917, %v919
          %v921 = vrot.slane %v899, %v920
          %v923 = vunpack.c.l.s4 1966171168
          %v924 = vunpack.c.0.s8 %v923
          %v925 = vlaneseq
          %v926 = vshrl.u32 %v925, 7
          %v927 = vsub.s32 %v924, %v926
          %v928 = vrot.slane %v900, %v927
          %v929 = vcombine.high %v907, %v907
          %v930 = vcombine.high %v914, %v914
          %v931 = vcombine.high %v921, %v921
          %v932 = vcombine.high %v928, %v928
          %v933 = vlaneseq
          %v934 = vshrl.u32 %v933, 7
          %v935 = vsub.s32 0, %v934
          %v936 = vrot.slane %v907, %v935
          %v937 = vlaneseq
          %v938 = vshrl.u32 %v937, 7
          %v939 = vsub.s32 0, %v938
          %v940 = vrot.slane %v921, %v939
          %v941 = vlaneseq
          %v942 = vshrl.u32 %v941, 7
          %v943 = vsub.s32 0, %v942
          %v944 = vrot.slane %v929, %v943
          %v945 = vlaneseq
          %v946 = vshrl.u32 %v945, 7
          %v947 = vsub.s32 0, %v946
          %v948 = vrot.slane %v931, %v947
          %v949 = vlaneseq
          %v950 = vshrl.u32 %v949, 7
          %v951 = vsub.s32 0, %v950
          %v952 = vrot.slane %v914, %v951
          %v953 = vlaneseq
          %v954 = vshrl.u32 %v953, 7
          %v955 = vsub.s32 0, %v954
          %v956 = vrot.slane %v928, %v955
          %v957 = vlaneseq
          %v958 = vshrl.u32 %v957, 7
          %v959 = vsub.s32 0, %v958
          %v960 = vrot.slane %v930, %v959
          %v961 = vlaneseq
          %v962 = vshrl.u32 %v961, 7
          %v963 = vsub.s32 0, %v962
          %v964 = vrot.slane %v932, %v963
          %v973 = vadd.f32 %v770, %v936
          %v974 = vadd.f32 %v771, %v940
          %v975 = vadd.f32 %v772, %v944
          %v976 = vadd.f32 %v773, %v948
          %v977 = vadd.f32 %v774, %v952
          %v978 = vadd.f32 %v775, %v956
          %v979 = vadd.f32 %v776, %v960
          %v980 = vadd.f32 %v777, %v964
          %v981 = vtanh.pop %v973
          %v982 = vtanh.pop %v974
          %v983 = vtanh.pop %v975
          %v984 = vtanh.pop %v976
          %v985 = vtanh.pop %v977
          %v986 = vtanh.pop %v978
          %v987 = vtanh.pop %v979
          %v988 = vtanh.pop %v980
          %v989 = vld [vmem:[%s5] sm:$0x1]
          %v991 = vlaneseq
          %v992 = vshrl.u32 %v991, 7
          %v993 = vsub.s32 0, %v992
          %v994 = vrot.slane %v989, %v993
          %v996 = vmul.f32 %v981, %v994
          %v997 = vmul.f32 %v982, %v994
          %v998 = vmul.f32 %v983, %v994
          %v999 = vmul.f32 %v984, %v994
          %v1000 = vmul.f32 %v985, %v994
          %v1001 = vmul.f32 %v986, %v994
          %v1002 = vmul.f32 %v987, %v994
          %v1003 = vmul.f32 %v988, %v994
          %1004 = vadd.xlane.f32.xlu0 %v996
          %v1005 = vpop.xlane.xlu0 %1004
          %1006 = vadd.xlane.f32.xlu0 %v997
          %v1007 = vpop.xlane.xlu0 %1006
          %1008 = vadd.xlane.f32.xlu0 %v998
          %v1009 = vpop.xlane.xlu0 %1008
          %1010 = vadd.xlane.f32.xlu0 %v999
          %v1011 = vpop.xlane.xlu0 %1010
          %1012 = vadd.xlane.f32.xlu0 %v1000
          %v1013 = vpop.xlane.xlu0 %1012
          %1014 = vadd.xlane.f32.xlu0 %v1001
          %v1015 = vpop.xlane.xlu0 %1014
          %1016 = vadd.xlane.f32.xlu0 %v1002
          %v1017 = vpop.xlane.xlu0 %1016
          %1018 = vadd.xlane.f32.xlu0 %v1003
          %v1019 = vpop.xlane.xlu0 %1018
          %v1028 = vlaneseq
          %v1029 = vand.u32 %v1028, 127
          %v1030 = vlaneseq
          %v1031 = vshrl.u32 %v1030, 7
          %v1032 = vsub.s32 %v1029, %v1031
          %v1033 = vrot.slane %v1005, %v1032
          %v1034 = vlaneseq
          %v1035 = vshrl.u32 %v1034, 7
          %v1036 = vsub.s32 %v1029, %v1035
          %v1037 = vrot.slane %v1007, %v1036
          %v1038 = vlaneseq
          %v1039 = vshrl.u32 %v1038, 7
          %v1040 = vsub.s32 %v1029, %v1039
          %v1041 = vrot.slane %v1009, %v1040
          %v1042 = vlaneseq
          %v1043 = vshrl.u32 %v1042, 7
          %v1044 = vsub.s32 %v1029, %v1043
          %v1045 = vrot.slane %v1011, %v1044
          %v1046 = vlaneseq
          %v1047 = vshrl.u32 %v1046, 7
          %v1048 = vsub.s32 %v1029, %v1047
          %v1049 = vrot.slane %v1013, %v1048
          %v1050 = vlaneseq
          %v1051 = vshrl.u32 %v1050, 7
          %v1052 = vsub.s32 %v1029, %v1051
          %v1053 = vrot.slane %v1015, %v1052
          %v1054 = vlaneseq
          %v1055 = vshrl.u32 %v1054, 7
          %v1056 = vsub.s32 %v1029, %v1055
          %v1057 = vrot.slane %v1017, %v1056
          %v1058 = vlaneseq
          %v1059 = vshrl.u32 %v1058, 7
          %v1060 = vsub.s32 %v1029, %v1059
          %v1061 = vrot.slane %v1019, %v1060
          %vm1062 = vcmask 1041409
          %v1063 = vsel %vm1062, %v1037, %v1033
          %vm1064 = vcmask 1042434
          %v1065 = vsel %vm1064, %v1041, %v1063
          %vm1066 = vcmask 1043459
          %v1067 = vsel %vm1066, %v1045, %v1065
          %vm1068 = vcmask 1044484
          %v1069 = vsel %vm1068, %v1049, %v1067
          %vm1070 = vcmask 1045509
          %v1071 = vsel %vm1070, %v1053, %v1069
          %vm1072 = vcmask 1046534
          %v1073 = vsel %vm1072, %v1057, %v1071
          %vm1074 = vcmask 1047559
          %v1075 = vsel %vm1074, %v1061, %v1073
          %vm1077 = vcmask 64512
          %v1078 = vsel %vm1077, %v1075, -inf
          %1079 = vmax.xlane.f32.xlu0 %v1078
          %v1080 = vpop.xlane.xlu0 %1079
          %v1082 = vlaneseq
          %v1083 = vshrl.u32 %v1082, 7
          %v1084 = vsub.s32 0, %v1083
          %v1085 = vrot.slane %v1080, %v1084
          %v1086 = vlaneseq
          %v1087 = vshrl.u32 %v1086, 7
          %v1088 = vsub.s32 1, %v1087
          %v1089 = vrot.slane %v1080, %v1088
          %v1090 = vlaneseq
          %v1091 = vshrl.u32 %v1090, 7
          %v1092 = vsub.s32 2, %v1091
          %v1093 = vrot.slane %v1080, %v1092
          %v1094 = vlaneseq
          %v1095 = vshrl.u32 %v1094, 7
          %v1096 = vsub.s32 3, %v1095
          %v1097 = vrot.slane %v1080, %v1096
          %v1098 = vlaneseq
          %v1099 = vshrl.u32 %v1098, 7
          %v1100 = vsub.s32 4, %v1099
          %v1101 = vrot.slane %v1080, %v1100
          %v1102 = vlaneseq
          %v1103 = vshrl.u32 %v1102, 7
          %v1104 = vsub.s32 5, %v1103
          %v1105 = vrot.slane %v1080, %v1104
          %v1106 = vlaneseq
          %v1107 = vshrl.u32 %v1106, 7
          %v1108 = vsub.s32 6, %v1107
          %v1109 = vrot.slane %v1080, %v1108
          %v1110 = vlaneseq
          %v1111 = vshrl.u32 %v1110, 7
          %v1112 = vsub.s32 7, %v1111
          %v1113 = vrot.slane %v1080, %v1112
          %v1122 = vsub.f32 %v1005, %v1085
          %v1123 = vsub.f32 %v1007, %v1089
          %v1124 = vsub.f32 %v1009, %v1093
          %v1125 = vsub.f32 %v1011, %v1097
          %v1126 = vsub.f32 %v1013, %v1101
          %v1127 = vsub.f32 %v1015, %v1105
          %v1128 = vsub.f32 %v1017, %v1109
          %v1129 = vsub.f32 %v1019, %v1113
          %v1130 = vmul.f32 %v1122, 1.442695
          %v1131 = vpow.pop %v1130
          %v1132 = vmul.f32 %v1123, 1.442695
          %v1133 = vpow.pop %v1132
          %v1134 = vmul.f32 %v1124, 1.442695
          %v1135 = vpow.pop %v1134
          %v1136 = vmul.f32 %v1125, 1.442695
          %v1137 = vpow.pop %v1136
          %v1138 = vmul.f32 %v1126, 1.442695
          %v1139 = vpow.pop %v1138
          %v1140 = vmul.f32 %v1127, 1.442695
          %v1141 = vpow.pop %v1140
          %v1142 = vmul.f32 %v1128, 1.442695
          %v1143 = vpow.pop %v1142
          %v1144 = vmul.f32 %v1129, 1.442695
          %v1145 = vpow.pop %v1144
          %1154 = vset.pattern.permute.xlu0 0
          %1155 = vperm.xlu0 %1154, %v1131
          %v1156 = vpop.permute.xlu0 %1155
          %1157 = vset.pattern.permute.xlu0 0
          %1158 = vperm.xlu0 %1157, %v1133
          %v1159 = vpop.permute.xlu0 %1158
          %1160 = vset.pattern.permute.xlu0 0
          %1161 = vperm.xlu0 %1160, %v1135
          %v1162 = vpop.permute.xlu0 %1161
          %1163 = vset.pattern.permute.xlu0 0
          %1164 = vperm.xlu0 %1163, %v1137
          %v1165 = vpop.permute.xlu0 %1164
          %1166 = vset.pattern.permute.xlu0 0
          %1167 = vperm.xlu0 %1166, %v1139
          %v1168 = vpop.permute.xlu0 %1167
          %1169 = vset.pattern.permute.xlu0 0
          %1170 = vperm.xlu0 %1169, %v1141
          %v1171 = vpop.permute.xlu0 %1170
          %1172 = vset.pattern.permute.xlu0 0
          %1173 = vperm.xlu0 %1172, %v1143
          %v1174 = vpop.permute.xlu0 %1173
          %1175 = vset.pattern.permute.xlu0 0
          %1176 = vperm.xlu0 %1175, %v1145
          %v1177 = vpop.permute.xlu0 %1176
          %v1178 = vlaneseq
          %v1179 = vshrl.u32 %v1178, 7
          %v1180 = vsub.s32 %v1029, %v1179
          %v1181 = vrot.slane %v1156, %v1180
          %v1182 = vlaneseq
          %v1183 = vshrl.u32 %v1182, 7
          %v1184 = vsub.s32 %v1029, %v1183
          %v1185 = vrot.slane %v1159, %v1184
          %v1186 = vlaneseq
          %v1187 = vshrl.u32 %v1186, 7
          %v1188 = vsub.s32 %v1029, %v1187
          %v1189 = vrot.slane %v1162, %v1188
          %v1190 = vlaneseq
          %v1191 = vshrl.u32 %v1190, 7
          %v1192 = vsub.s32 %v1029, %v1191
          %v1193 = vrot.slane %v1165, %v1192
          %v1194 = vlaneseq
          %v1195 = vshrl.u32 %v1194, 7
          %v1196 = vsub.s32 %v1029, %v1195
          %v1197 = vrot.slane %v1168, %v1196
          %v1198 = vlaneseq
          %v1199 = vshrl.u32 %v1198, 7
          %v1200 = vsub.s32 %v1029, %v1199
          %v1201 = vrot.slane %v1171, %v1200
          %v1202 = vlaneseq
          %v1203 = vshrl.u32 %v1202, 7
          %v1204 = vsub.s32 %v1029, %v1203
          %v1205 = vrot.slane %v1174, %v1204
          %v1206 = vlaneseq
          %v1207 = vshrl.u32 %v1206, 7
          %v1208 = vsub.s32 %v1029, %v1207
          %v1209 = vrot.slane %v1177, %v1208
          %v1210 = vsel %vm1062, %v1185, %v1181
          %v1211 = vsel %vm1064, %v1189, %v1210
          %v1212 = vsel %vm1066, %v1193, %v1211
          %v1213 = vsel %vm1068, %v1197, %v1212
          %v1214 = vsel %vm1070, %v1201, %v1213
          %v1215 = vsel %vm1072, %v1205, %v1214
          %v1216 = vsel %vm1074, %v1209, %v1215
          %v1218 = vsel %vm1077, %v1216, 0.0
          %1219 = vadd.xlane.f32.xlu0 %v1218
          %v1220 = vpop.xlane.xlu0 %1219
          %v1222 = vlaneseq
          %v1223 = vshrl.u32 %v1222, 7
          %v1224 = vsub.s32 0, %v1223
          %v1225 = vrot.slane %v1220, %v1224
          %v1226 = vlaneseq
          %v1227 = vshrl.u32 %v1226, 7
          %v1228 = vsub.s32 1, %v1227
          %v1229 = vrot.slane %v1220, %v1228
          %v1230 = vlaneseq
          %v1231 = vshrl.u32 %v1230, 7
          %v1232 = vsub.s32 2, %v1231
          %v1233 = vrot.slane %v1220, %v1232
          %v1234 = vlaneseq
          %v1235 = vshrl.u32 %v1234, 7
          %v1236 = vsub.s32 3, %v1235
          %v1237 = vrot.slane %v1220, %v1236
          %v1238 = vlaneseq
          %v1239 = vshrl.u32 %v1238, 7
          %v1240 = vsub.s32 4, %v1239
          %v1241 = vrot.slane %v1220, %v1240
          %v1242 = vlaneseq
          %v1243 = vshrl.u32 %v1242, 7
          %v1244 = vsub.s32 5, %v1243
          %v1245 = vrot.slane %v1220, %v1244
          %v1246 = vlaneseq
          %v1247 = vshrl.u32 %v1246, 7
          %v1248 = vsub.s32 6, %v1247
          %v1249 = vrot.slane %v1220, %v1248
          %v1250 = vlaneseq
          %v1251 = vshrl.u32 %v1250, 7
          %v1252 = vsub.s32 7, %v1251
          %v1253 = vrot.slane %v1220, %v1252
          %v1262 = vrcp.pop %v1225
          %v1263 = vmul.f32 %v1131, %v1262
          %v1264 = vrcp.pop %v1229
          %v1265 = vmul.f32 %v1133, %v1264
          %v1266 = vrcp.pop %v1233
          %v1267 = vmul.f32 %v1135, %v1266
          %v1268 = vrcp.pop %v1237
          %v1269 = vmul.f32 %v1137, %v1268
          %v1270 = vrcp.pop %v1241
          %v1271 = vmul.f32 %v1139, %v1270
          %v1272 = vrcp.pop %v1245
          %v1273 = vmul.f32 %v1141, %v1272
          %v1274 = vrcp.pop %v1249
          %v1275 = vmul.f32 %v1143, %v1274
          %v1276 = vrcp.pop %v1253
          %v1277 = vmul.f32 %v1145, %v1276
          %1279 = vset.pattern.permute.xlu0 0
          %1280 = vperm.xlu0 %1279, %v1263
          %v1281 = vpop.permute.xlu0 %1280
          %1284 = vset.pattern.permute.xlu0 0
          %1285 = vperm.xlu0 %1284, %v1265
          %v1286 = vpop.permute.xlu0 %1285
          %1289 = vset.pattern.permute.xlu0 0
          %1290 = vperm.xlu0 %1289, %v1267
          %v1291 = vpop.permute.xlu0 %1290
          %1294 = vset.pattern.permute.xlu0 0
          %1295 = vperm.xlu0 %1294, %v1269
          %v1296 = vpop.permute.xlu0 %1295
          %1299 = vset.pattern.permute.xlu0 0
          %1300 = vperm.xlu0 %1299, %v1271
          %v1301 = vpop.permute.xlu0 %1300
          %1304 = vset.pattern.permute.xlu0 0
          %1305 = vperm.xlu0 %1304, %v1273
          %v1306 = vpop.permute.xlu0 %1305
          %1309 = vset.pattern.permute.xlu0 0
          %1310 = vperm.xlu0 %1309, %v1275
          %v1311 = vpop.permute.xlu0 %1310
          %1314 = vset.pattern.permute.xlu0 0
          %1315 = vperm.xlu0 %1314, %v1277
          %v1316 = vpop.permute.xlu0 %1315
          %v1318 = vmul.f32 %v1281, %v754
          %v1319 = vmul.f32 %v1281, %v755
          %v1320 = vmul.f32 %v1286, %v756
          %v1321 = vmul.f32 %v1286, %v757
          %v1322 = vmul.f32 %v1291, %v758
          %v1323 = vmul.f32 %v1291, %v759
          %v1324 = vmul.f32 %v1296, %v760
          %v1325 = vmul.f32 %v1296, %v761
          %v1326 = vmul.f32 %v1301, %v762
          %v1327 = vmul.f32 %v1301, %v763
          %v1328 = vmul.f32 %v1306, %v764
          %v1329 = vmul.f32 %v1306, %v765
          %v1330 = vmul.f32 %v1311, %v766
          %v1331 = vmul.f32 %v1311, %v767
          %v1332 = vmul.f32 %v1316, %v768
          %v1333 = vmul.f32 %v1316, %v769
          %v1334 = vrot.slane %v1318, 4
          %v1335 = vadd.f32 %v1318, %v1334
          %v1336 = vrot.slane %v1335, 2
          %v1337 = vadd.f32 %v1335, %v1336
          %v1338 = vrot.slane %v1337, 1
          %v1339 = vadd.f32 %v1337, %v1338
          %v1340 = vrot.slane %v1319, 4
          %v1341 = vadd.f32 %v1319, %v1340
          %v1342 = vrot.slane %v1341, 2
          %v1343 = vadd.f32 %v1341, %v1342
          %v1344 = vrot.slane %v1343, 1
          %v1345 = vadd.f32 %v1343, %v1344
          %v1346 = vrot.slane %v1320, 4
          %v1347 = vadd.f32 %v1320, %v1346
          %v1348 = vrot.slane %v1347, 2
          %v1349 = vadd.f32 %v1347, %v1348
          %v1350 = vrot.slane %v1349, 1
          %v1351 = vadd.f32 %v1349, %v1350
          %v1352 = vrot.slane %v1321, 4
          %v1353 = vadd.f32 %v1321, %v1352
          %v1354 = vrot.slane %v1353, 2
          %v1355 = vadd.f32 %v1353, %v1354
          %v1356 = vrot.slane %v1355, 1
          %v1357 = vadd.f32 %v1355, %v1356
          %v1358 = vrot.slane %v1322, 4
          %v1359 = vadd.f32 %v1322, %v1358
          %v1360 = vrot.slane %v1359, 2
          %v1361 = vadd.f32 %v1359, %v1360
          %v1362 = vrot.slane %v1361, 1
          %v1363 = vadd.f32 %v1361, %v1362
          %v1364 = vrot.slane %v1323, 4
          %v1365 = vadd.f32 %v1323, %v1364
          %v1366 = vrot.slane %v1365, 2
          %v1367 = vadd.f32 %v1365, %v1366
          %v1368 = vrot.slane %v1367, 1
          %v1369 = vadd.f32 %v1367, %v1368
          %v1370 = vrot.slane %v1324, 4
          %v1371 = vadd.f32 %v1324, %v1370
          %v1372 = vrot.slane %v1371, 2
          %v1373 = vadd.f32 %v1371, %v1372
          %v1374 = vrot.slane %v1373, 1
          %v1375 = vadd.f32 %v1373, %v1374
          %v1376 = vrot.slane %v1325, 4
          %v1377 = vadd.f32 %v1325, %v1376
          %v1378 = vrot.slane %v1377, 2
          %v1379 = vadd.f32 %v1377, %v1378
          %v1380 = vrot.slane %v1379, 1
          %v1381 = vadd.f32 %v1379, %v1380
          %v1382 = vrot.slane %v1326, 4
          %v1383 = vadd.f32 %v1326, %v1382
          %v1384 = vrot.slane %v1383, 2
          %v1385 = vadd.f32 %v1383, %v1384
          %v1386 = vrot.slane %v1385, 1
          %v1387 = vadd.f32 %v1385, %v1386
          %v1388 = vrot.slane %v1327, 4
          %v1389 = vadd.f32 %v1327, %v1388
          %v1390 = vrot.slane %v1389, 2
          %v1391 = vadd.f32 %v1389, %v1390
          %v1392 = vrot.slane %v1391, 1
          %v1393 = vadd.f32 %v1391, %v1392
          %v1394 = vrot.slane %v1328, 4
          %v1395 = vadd.f32 %v1328, %v1394
          %v1396 = vrot.slane %v1395, 2
          %v1397 = vadd.f32 %v1395, %v1396
          %v1398 = vrot.slane %v1397, 1
          %v1399 = vadd.f32 %v1397, %v1398
          %v1400 = vrot.slane %v1329, 4
          %v1401 = vadd.f32 %v1329, %v1400
          %v1402 = vrot.slane %v1401, 2
          %v1403 = vadd.f32 %v1401, %v1402
          %v1404 = vrot.slane %v1403, 1
          %v1405 = vadd.f32 %v1403, %v1404
          %v1406 = vrot.slane %v1330, 4
          %v1407 = vadd.f32 %v1330, %v1406
          %v1408 = vrot.slane %v1407, 2
          %v1409 = vadd.f32 %v1407, %v1408
          %v1410 = vrot.slane %v1409, 1
          %v1411 = vadd.f32 %v1409, %v1410
          %v1412 = vrot.slane %v1331, 4
          %v1413 = vadd.f32 %v1331, %v1412
          %v1414 = vrot.slane %v1413, 2
          %v1415 = vadd.f32 %v1413, %v1414
          %v1416 = vrot.slane %v1415, 1
          %v1417 = vadd.f32 %v1415, %v1416
          %v1418 = vrot.slane %v1332, 4
          %v1419 = vadd.f32 %v1332, %v1418
          %v1420 = vrot.slane %v1419, 2
          %v1421 = vadd.f32 %v1419, %v1420
          %v1422 = vrot.slane %v1421, 1
          %v1423 = vadd.f32 %v1421, %v1422
          %v1424 = vrot.slane %v1333, 4
          %v1425 = vadd.f32 %v1333, %v1424
          %v1426 = vrot.slane %v1425, 2
          %v1427 = vadd.f32 %v1425, %v1426
          %v1428 = vrot.slane %v1427, 1
          %v1429 = vadd.f32 %v1427, %v1428
          %v1446 = vsel %vm1062, %v1351, %v1339
          %v1447 = vsel %vm1064, %v1363, %v1446
          %v1448 = vsel %vm1066, %v1375, %v1447
          %v1449 = vsel %vm1068, %v1387, %v1448
          %v1450 = vsel %vm1070, %v1399, %v1449
          %v1451 = vsel %vm1072, %v1411, %v1450
          %v1452 = vsel %vm1074, %v1423, %v1451
          %v1453 = vsel %vm1062, %v1357, %v1345
          %v1454 = vsel %vm1064, %v1369, %v1453
          %v1455 = vsel %vm1066, %v1381, %v1454
          %v1456 = vsel %vm1068, %v1393, %v1455
          %v1457 = vsel %vm1070, %v1405, %v1456
          %v1458 = vsel %vm1072, %v1417, %v1457
          %v1459 = vsel %vm1074, %v1429, %v1458
          %v1462 = vpack.c.bf16 %v752, %v752
          %v1463 = vpack.c.bf16 %v1452, %v1452
          %v1464 = vpack.c.bf16 %v1459, %v1459
          %v1465 = vld [vmem:[%s6] sm:$0xff]
          %v1466 = vld [vmem:[%s6 + $0x8] sm:$0xf]
          %v1467 = vld [vmem:[%s6 + $0xc] sm:$0xff]
          %v1468 = vld [vmem:[%s6 + $0x14] sm:$0xf]
          %v1469 = vld [vmem:[%s6 + $0x18] sm:$0xff]
          %v1470 = vld [vmem:[%s6 + $0x20] sm:$0xf]
          %v1471 = vld [vmem:[%s6 + $0x24] sm:$0xff]
          %v1472 = vld [vmem:[%s6 + $0x2c] sm:$0xf]
          %v1473 = vld [vmem:[%s6 + $0x30] sm:$0xff]
          %v1474 = vld [vmem:[%s6 + $0x38] sm:$0xf]
          %v1475 = vld [vmem:[%s6 + $0x3c] sm:$0xff]
          %v1476 = vld [vmem:[%s6 + $0x44] sm:$0xf]
          %v1477 = vld [vmem:[%s6 + $0x48] sm:$0xff]
          %v1478 = vld [vmem:[%s6 + $0x50] sm:$0xf]
          %v1479 = vld [vmem:[%s6 + $0x54] sm:$0xff]
          %v1480 = vld [vmem:[%s6 + $0x5c] sm:$0xf]
          %v1481 = vld [vmem:[%s6 + $0x60] sm:$0xff]
          %v1482 = vld [vmem:[%s6 + $0x68] sm:$0xf]
          %v1483 = vld [vmem:[%s6 + $0x6c] sm:$0xff]
          %v1484 = vld [vmem:[%s6 + $0x74] sm:$0xf]
          %v1485 = vld [vmem:[%s6 + $0x78] sm:$0xff]
          %v1486 = vld [vmem:[%s6 + $0x80] sm:$0xf]
          %v1487 = vld [vmem:[%s6 + $0x84] sm:$0xff]
          %v1488 = vld [vmem:[%s6 + $0x8c] sm:$0xf]
          %v1489 = vld [vmem:[%s6 + $0x90] sm:$0xff]
          %v1490 = vld [vmem:[%s6 + $0x98] sm:$0xf]
          %v1491 = vld [vmem:[%s6 + $0x9c] sm:$0xff]
          %v1492 = vld [vmem:[%s6 + $0xa4] sm:$0xf]
          %v1493 = vld [vmem:[%s6 + $0xa8] sm:$0xff]
          %v1494 = vld [vmem:[%s6 + $0xb0] sm:$0xf]
          %v1495 = vld [vmem:[%s6 + $0xb4] sm:$0xff]
          %v1496 = vld [vmem:[%s6 + $0xbc] sm:$0xf]
          %v1497 = vld [vmem:[%s6 + $0xc0] sm:$0xff]
          %v1498 = vld [vmem:[%s6 + $0xc8] sm:$0xf]
          %v1499 = vld [vmem:[%s6 + $0xcc] sm:$0xff]
          %v1500 = vld [vmem:[%s6 + $0xd4] sm:$0xf]
          %v1501 = vld [vmem:[%s6 + $0xd8] sm:$0xff]
          %v1502 = vld [vmem:[%s6 + $0xe0] sm:$0xf]
          %v1503 = vld [vmem:[%s6 + $0xe4] sm:$0xff]
          %v1504 = vld [vmem:[%s6 + $0xec] sm:$0xf]
          %v1505 = vld [vmem:[%s6 + $0xf0] sm:$0xff]
          %v1506 = vld [vmem:[%s6 + $0xf8] sm:$0xf]
          %v1507 = vld [vmem:[%s6 + $0xfc] sm:$0xff]
          %v1508 = vld [vmem:[%s6 + $0x104] sm:$0xf]
          %v1509 = vld [vmem:[%s6 + $0x108] sm:$0xff]
          %v1510 = vld [vmem:[%s6 + $0x110] sm:$0xf]
          %v1511 = vld [vmem:[%s6 + $0x114] sm:$0xff]
          %v1512 = vld [vmem:[%s6 + $0x11c] sm:$0xf]
          %v1513 = vld [vmem:[%s6 + $0x120] sm:$0xff]
          %v1514 = vld [vmem:[%s6 + $0x128] sm:$0xf]
          %v1515 = vld [vmem:[%s6 + $0x12c] sm:$0xff]
          %v1516 = vld [vmem:[%s6 + $0x134] sm:$0xf]
          %v1517 = vld [vmem:[%s6 + $0x138] sm:$0xff]
          %v1518 = vld [vmem:[%s6 + $0x140] sm:$0xf]
          %v1519 = vld [vmem:[%s6 + $0x144] sm:$0xff]
          %v1520 = vld [vmem:[%s6 + $0x14c] sm:$0xf]
          %v1521 = vld [vmem:[%s6 + $0x150] sm:$0xff]
          %v1522 = vld [vmem:[%s6 + $0x158] sm:$0xf]
          %v1523 = vld [vmem:[%s6 + $0x15c] sm:$0xff]
          %v1524 = vld [vmem:[%s6 + $0x164] sm:$0xf]
          %v1525 = vld [vmem:[%s6 + $0x168] sm:$0xff]
          %v1526 = vld [vmem:[%s6 + $0x170] sm:$0xf]
          %v1527 = vld [vmem:[%s6 + $0x174] sm:$0xff]
          %v1528 = vld [vmem:[%s6 + $0x17c] sm:$0xf]
          %v1529 = vld [vmem:[%s6 + $0x180] sm:$0xff]
          %v1530 = vld [vmem:[%s6 + $0x188] sm:$0xf]
          %v1531 = vld [vmem:[%s6 + $0x18c] sm:$0xff]
          %v1532 = vld [vmem:[%s6 + $0x194] sm:$0xf]
          %v1533 = vld [vmem:[%s6 + $0x198] sm:$0xff]
          %v1534 = vld [vmem:[%s6 + $0x1a0] sm:$0xf]
          %v1535 = vld [vmem:[%s6 + $0x1a4] sm:$0xff]
          %v1536 = vld [vmem:[%s6 + $0x1ac] sm:$0xf]
          %v1537 = vld [vmem:[%s6 + $0x1b0] sm:$0xff]
          %v1538 = vld [vmem:[%s6 + $0x1b8] sm:$0xf]
          %v1539 = vld [vmem:[%s6 + $0x1bc] sm:$0xff]
          %v1540 = vld [vmem:[%s6 + $0x1c4] sm:$0xf]
          %v1541 = vld [vmem:[%s6 + $0x1c8] sm:$0xff]
          %v1542 = vld [vmem:[%s6 + $0x1d0] sm:$0xf]
          %v1543 = vld [vmem:[%s6 + $0x1d4] sm:$0xff]
          %v1544 = vld [vmem:[%s6 + $0x1dc] sm:$0xf]
          %v1545 = vld [vmem:[%s6 + $0x1e0] sm:$0xff]
          %v1546 = vld [vmem:[%s6 + $0x1e8] sm:$0xf]
          %v1547 = vld [vmem:[%s6 + $0x1ec] sm:$0xff]
          %v1548 = vld [vmem:[%s6 + $0x1f4] sm:$0xf]
          %v1549 = vld [vmem:[%s6 + $0x1f8] sm:$0xff]
          %v1550 = vld [vmem:[%s6 + $0x200] sm:$0xf]
          %v1551 = vld [vmem:[%s6 + $0x204] sm:$0xff]
          %v1552 = vld [vmem:[%s6 + $0x20c] sm:$0xf]
          %v1553 = vld [vmem:[%s6 + $0x210] sm:$0xff]
          %v1554 = vld [vmem:[%s6 + $0x218] sm:$0xf]
          %v1555 = vld [vmem:[%s6 + $0x21c] sm:$0xff]
          %v1556 = vld [vmem:[%s6 + $0x224] sm:$0xf]
          %v1557 = vld [vmem:[%s6 + $0x228] sm:$0xff]
          %v1558 = vld [vmem:[%s6 + $0x230] sm:$0xf]
          %v1559 = vld [vmem:[%s6 + $0x234] sm:$0xff]
          %v1560 = vld [vmem:[%s6 + $0x23c] sm:$0xf]
          %v1561 = vld [vmem:[%s7] sm:$0x7]
          %v1563 = vlaneseq
          %v1564 = vshrl.u32 %v1563, 7
          %v1565 = vsub.s32 0, %v1564
          %v1566 = vrot.slane %v1561, %v1565
          %v1567 = vlaneseq
          %v1568 = vshrl.u32 %v1567, 7
          %v1569 = vsub.s32 1, %v1568
          %v1570 = vrot.slane %v1561, %v1569
          %v1571 = vlaneseq
          %v1572 = vshrl.u32 %v1571, 7
          %v1573 = vsub.s32 2, %v1572
          %v1574 = vrot.slane %v1561, %v1573
          %v1674 = vunpack.c.l.b16 %v1465
          %v1675 = vunpack.c.h.b16 %v1465
          %v1676 = vunpack.c.l.b16 %v1466
          %v1677 = vunpack.c.l.b16 %v1467
          %v1678 = vunpack.c.h.b16 %v1467
          %v1679 = vunpack.c.l.b16 %v1468
          %v1680 = vunpack.c.l.b16 %v1469
          %v1681 = vunpack.c.h.b16 %v1469
          %v1682 = vunpack.c.l.b16 %v1470
          %v1683 = vunpack.c.l.b16 %v1471
          %v1684 = vunpack.c.h.b16 %v1471
          %v1685 = vunpack.c.l.b16 %v1472
          %v1686 = vunpack.c.l.b16 %v1473
          %v1687 = vunpack.c.h.b16 %v1473
          %v1688 = vunpack.c.l.b16 %v1474
          %v1689 = vunpack.c.l.b16 %v1475
          %v1690 = vunpack.c.h.b16 %v1475
          %v1691 = vunpack.c.l.b16 %v1476
          %v1692 = vunpack.c.l.b16 %v1477
          %v1693 = vunpack.c.h.b16 %v1477
          %v1694 = vunpack.c.l.b16 %v1478
          %v1695 = vunpack.c.l.b16 %v1479
          %v1696 = vunpack.c.h.b16 %v1479
          %v1697 = vunpack.c.l.b16 %v1480
          %v1698 = vunpack.c.l.b16 %v1481
          %v1699 = vunpack.c.h.b16 %v1481
          %v1700 = vunpack.c.l.b16 %v1482
          %v1701 = vunpack.c.l.b16 %v1483
          %v1702 = vunpack.c.h.b16 %v1483
          %v1703 = vunpack.c.l.b16 %v1484
          %v1704 = vunpack.c.l.b16 %v1485
          %v1705 = vunpack.c.h.b16 %v1485
          %v1706 = vunpack.c.l.b16 %v1486
          %v1707 = vunpack.c.l.b16 %v1487
          %v1708 = vunpack.c.h.b16 %v1487
          %v1709 = vunpack.c.l.b16 %v1488
          %v1710 = vunpack.c.l.b16 %v1489
          %v1711 = vunpack.c.h.b16 %v1489
          %v1712 = vunpack.c.l.b16 %v1490
          %v1713 = vunpack.c.l.b16 %v1491
          %v1714 = vunpack.c.h.b16 %v1491
          %v1715 = vunpack.c.l.b16 %v1492
          %v1716 = vunpack.c.l.b16 %v1493
          %v1717 = vunpack.c.h.b16 %v1493
          %v1718 = vunpack.c.l.b16 %v1494
          %v1719 = vunpack.c.l.b16 %v1495
          %v1720 = vunpack.c.h.b16 %v1495
          %v1721 = vunpack.c.l.b16 %v1496
          %v1722 = vunpack.c.l.b16 %v1497
          %v1723 = vunpack.c.h.b16 %v1497
          %v1724 = vunpack.c.l.b16 %v1498
          %v1725 = vunpack.c.l.b16 %v1499
          %v1726 = vunpack.c.h.b16 %v1499
          %v1727 = vunpack.c.l.b16 %v1500
          %v1728 = vunpack.c.l.b16 %v1501
          %v1729 = vunpack.c.h.b16 %v1501
          %v1730 = vunpack.c.l.b16 %v1502
          %v1731 = vunpack.c.l.b16 %v1503
          %v1732 = vunpack.c.h.b16 %v1503
          %v1733 = vunpack.c.l.b16 %v1504
          %v1734 = vunpack.c.l.b16 %v1505
          %v1735 = vunpack.c.h.b16 %v1505
          %v1736 = vunpack.c.l.b16 %v1506
          %v1737 = vunpack.c.l.b16 %v1507
          %v1738 = vunpack.c.h.b16 %v1507
          %v1739 = vunpack.c.l.b16 %v1508
          %v1740 = vunpack.c.l.b16 %v1509
          %v1741 = vunpack.c.h.b16 %v1509
          %v1742 = vunpack.c.l.b16 %v1510
          %v1743 = vunpack.c.l.b16 %v1511
          %v1744 = vunpack.c.h.b16 %v1511
          %v1745 = vunpack.c.l.b16 %v1512
          %v1746 = vunpack.c.l.b16 %v1513
          %v1747 = vunpack.c.h.b16 %v1513
          %v1748 = vunpack.c.l.b16 %v1514
          %v1749 = vunpack.c.l.b16 %v1515
          %v1750 = vunpack.c.h.b16 %v1515
          %v1751 = vunpack.c.l.b16 %v1516
          %v1752 = vunpack.c.l.b16 %v1517
          %v1753 = vunpack.c.h.b16 %v1517
          %v1754 = vunpack.c.l.b16 %v1518
          %v1755 = vunpack.c.l.b16 %v1519
          %v1756 = vunpack.c.h.b16 %v1519
          %v1757 = vunpack.c.l.b16 %v1520
          %v1758 = vunpack.c.l.b16 %v1521
          %v1759 = vunpack.c.h.b16 %v1521
          %v1760 = vunpack.c.l.b16 %v1522
          %v1761 = vunpack.c.l.b16 %v1523
          %v1762 = vunpack.c.h.b16 %v1523
          %v1763 = vunpack.c.l.b16 %v1524
          %v1764 = vunpack.c.l.b16 %v1525
          %v1765 = vunpack.c.h.b16 %v1525
          %v1766 = vunpack.c.l.b16 %v1526
          %v1767 = vunpack.c.l.b16 %v1527
          %v1768 = vunpack.c.h.b16 %v1527
          %v1769 = vunpack.c.l.b16 %v1528
          %v1770 = vunpack.c.l.b16 %v1529
          %v1771 = vunpack.c.h.b16 %v1529
          %v1772 = vunpack.c.l.b16 %v1530
          %v1773 = vunpack.c.l.b16 %v1531
          %v1774 = vunpack.c.h.b16 %v1531
          %v1775 = vunpack.c.l.b16 %v1532
          %v1776 = vunpack.c.l.b16 %v1533
          %v1777 = vunpack.c.h.b16 %v1533
          %v1778 = vunpack.c.l.b16 %v1534
          %v1779 = vunpack.c.l.b16 %v1535
          %v1780 = vunpack.c.h.b16 %v1535
          %v1781 = vunpack.c.l.b16 %v1536
          %v1782 = vunpack.c.l.b16 %v1537
          %v1783 = vunpack.c.h.b16 %v1537
          %v1784 = vunpack.c.l.b16 %v1538
          %v1785 = vunpack.c.l.b16 %v1539
          %v1786 = vunpack.c.h.b16 %v1539
          %v1787 = vunpack.c.l.b16 %v1540
          %v1788 = vunpack.c.l.b16 %v1541
          %v1789 = vunpack.c.h.b16 %v1541
          %v1790 = vunpack.c.l.b16 %v1542
          %v1791 = vunpack.c.l.b16 %v1543
          %v1792 = vunpack.c.h.b16 %v1543
          %v1793 = vunpack.c.l.b16 %v1544
          %v1794 = vunpack.c.l.b16 %v1545
          %v1795 = vunpack.c.h.b16 %v1545
          %v1796 = vunpack.c.l.b16 %v1546
          %v1797 = vunpack.c.l.b16 %v1547
          %v1798 = vunpack.c.h.b16 %v1547
          %v1799 = vunpack.c.l.b16 %v1548
          %v1800 = vunpack.c.l.b16 %v1549
          %v1801 = vunpack.c.h.b16 %v1549
          %v1802 = vunpack.c.l.b16 %v1550
          %v1803 = vunpack.c.l.b16 %v1551
          %v1804 = vunpack.c.h.b16 %v1551
          %v1805 = vunpack.c.l.b16 %v1552
          %v1806 = vunpack.c.l.b16 %v1553
          %v1807 = vunpack.c.h.b16 %v1553
          %v1808 = vunpack.c.l.b16 %v1554
          %v1809 = vunpack.c.l.b16 %v1555
          %v1810 = vunpack.c.h.b16 %v1555
          %v1811 = vunpack.c.l.b16 %v1556
          %v1812 = vunpack.c.l.b16 %v1557
          %v1813 = vunpack.c.h.b16 %v1557
          %v1814 = vunpack.c.l.b16 %v1558
          %v1815 = vunpack.c.l.b16 %v1559
          %v1816 = vunpack.c.h.b16 %v1559
          %v1817 = vunpack.c.l.b16 %v1560
          %v1818 = vpack.c.b16 %v1677, %v1674
          %v1819 = vpack.c.b16 %v1678, %v1675
          %v1820 = vpack.c.b16 %v1679, %v1676
          %v1821 = vpack.c.b16 %v1683, %v1680
          %v1822 = vpack.c.b16 %v1684, %v1681
          %v1823 = vpack.c.b16 %v1685, %v1682
          %v1824 = vpack.c.b16 %v1689, %v1686
          %v1825 = vpack.c.b16 %v1690, %v1687
          %v1826 = vpack.c.b16 %v1691, %v1688
          %v1827 = vpack.c.b16 %v1695, %v1692
          %v1828 = vpack.c.b16 %v1696, %v1693
          %v1829 = vpack.c.b16 %v1697, %v1694
          %v1830 = vpack.c.b16 %v1701, %v1698
          %v1831 = vpack.c.b16 %v1702, %v1699
          %v1832 = vpack.c.b16 %v1703, %v1700
          %v1833 = vpack.c.b16 %v1707, %v1704
          %v1834 = vpack.c.b16 %v1708, %v1705
          %v1835 = vpack.c.b16 %v1709, %v1706
          %v1836 = vpack.c.b16 %v1713, %v1710
          %v1837 = vpack.c.b16 %v1714, %v1711
          %v1838 = vpack.c.b16 %v1715, %v1712
          %v1839 = vpack.c.b16 %v1719, %v1716
          %v1840 = vpack.c.b16 %v1720, %v1717
          %v1841 = vpack.c.b16 %v1721, %v1718
          %v1842 = vpack.c.b16 %v1725, %v1722
          %v1843 = vpack.c.b16 %v1726, %v1723
          %v1844 = vpack.c.b16 %v1727, %v1724
          %v1845 = vpack.c.b16 %v1731, %v1728
          %v1846 = vpack.c.b16 %v1732, %v1729
          %v1847 = vpack.c.b16 %v1733, %v1730
          %v1848 = vpack.c.b16 %v1737, %v1734
          %v1849 = vpack.c.b16 %v1738, %v1735
          %v1850 = vpack.c.b16 %v1739, %v1736
          %v1851 = vpack.c.b16 %v1743, %v1740
          %v1852 = vpack.c.b16 %v1744, %v1741
          %v1853 = vpack.c.b16 %v1745, %v1742
          %v1854 = vpack.c.b16 %v1749, %v1746
          %v1855 = vpack.c.b16 %v1750, %v1747
          %v1856 = vpack.c.b16 %v1751, %v1748
          %v1857 = vpack.c.b16 %v1755, %v1752
          %v1858 = vpack.c.b16 %v1756, %v1753
          %v1859 = vpack.c.b16 %v1757, %v1754
          %v1860 = vpack.c.b16 %v1761, %v1758
          %v1861 = vpack.c.b16 %v1762, %v1759
          %v1862 = vpack.c.b16 %v1763, %v1760
          %v1863 = vpack.c.b16 %v1767, %v1764
          %v1864 = vpack.c.b16 %v1768, %v1765
          %v1865 = vpack.c.b16 %v1769, %v1766
          %v1866 = vpack.c.b16 %v1773, %v1770
          %v1867 = vpack.c.b16 %v1774, %v1771
          %v1868 = vpack.c.b16 %v1775, %v1772
          %v1869 = vpack.c.b16 %v1779, %v1776
          %v1870 = vpack.c.b16 %v1780, %v1777
          %v1871 = vpack.c.b16 %v1781, %v1778
          %v1872 = vpack.c.b16 %v1785, %v1782
          %v1873 = vpack.c.b16 %v1786, %v1783
          %v1874 = vpack.c.b16 %v1787, %v1784
          %v1875 = vpack.c.b16 %v1791, %v1788
          %v1876 = vpack.c.b16 %v1792, %v1789
          %v1877 = vpack.c.b16 %v1793, %v1790
          %v1878 = vpack.c.b16 %v1797, %v1794
          %v1879 = vpack.c.b16 %v1798, %v1795
          %v1880 = vpack.c.b16 %v1799, %v1796
          %v1881 = vpack.c.b16 %v1803, %v1800
          %v1882 = vpack.c.b16 %v1804, %v1801
          %v1883 = vpack.c.b16 %v1805, %v1802
          %v1884 = vpack.c.b16 %v1809, %v1806
          %v1885 = vpack.c.b16 %v1810, %v1807
          %v1886 = vpack.c.b16 %v1811, %v1808
          %v1887 = vpack.c.b16 %v1815, %v1812
          %v1888 = vpack.c.b16 %v1816, %v1813
          %v1889 = vpack.c.b16 %v1817, %v1814
          %1962 = vmatprep.subr.bf16.mxu0 %v1819
          %1963 = vmatpush1.bf16.msra.mxu0 %v1818
          %1964 = vmatprep.subr.bf16.mxu0 %v1822
          %1965 = vmatpush1.bf16.msra.mxu0 %v1821
          %1966 = vmatprep.subr.bf16.mxu0 %v1825
          %1967 = vmatpush1.bf16.msra.mxu0 %v1824
          %1968 = vmatprep.subr.bf16.mxu0 %v1828
          %1969 = vmatpush1.bf16.msra.mxu0 %v1827
          %1970 = vmatprep.subr.bf16.mxu0 %v1831
          %1971 = vmatpush1.bf16.msra.mxu0 %v1830
          %1972 = vmatprep.subr.bf16.mxu0 %v1834
          %1973 = vmatpush1.bf16.msra.mxu0 %v1833
          %1974 = vmatprep.subr.bf16.mxu0 %v1837
          %1975 = vmatpush1.bf16.msra.mxu0 %v1836
          %1976 = vmatprep.subr.bf16.mxu0 %v1840
          %1977 = vmatpush1.bf16.msra.mxu0 %v1839
          %1978 = vmatprep.subr.bf16.mxu0 %v1843
          %1979 = vmatpush1.bf16.msra.mxu0 %v1842
          %1980 = vmatprep.subr.bf16.mxu0 %v1846
          %1981 = vmatpush1.bf16.msra.mxu0 %v1845
          %1982 = vmatprep.subr.bf16.mxu0 %v1849
          %1983 = vmatpush1.bf16.msra.mxu0 %v1848
          %1984 = vmatprep.subr.bf16.mxu0 %v1852
          %1985 = vmatpush1.bf16.msra.mxu0 %v1851
          %1986 = vmatprep.subr.bf16.mxu0 %v1855
          %1987 = vmatpush1.bf16.msra.mxu0 %v1854
          %1988 = vmatprep.subr.bf16.mxu0 %v1858
          %1989 = vmatpush1.bf16.msra.mxu0 %v1857
          %1990 = vmatprep.subr.bf16.mxu0 %v1861
          %1991 = vmatpush1.bf16.msra.mxu0 %v1860
          %1992 = vmatprep.subr.bf16.mxu0 %v1864
          %1993 = vmatpush1.bf16.msra.mxu0 %v1863
          %1994 = vmatprep.mubr.bf16.mxu0 %v1463
          %1995 = vmatmul.mubr.bf16.gmra.mrb[0].mxu0 %v1462
          %v1996 = vpop.f32.mrb[0].mxu0
          %v1997 = vadd.f32 %v1566, %v1996
          %v1998 = vpop.f32.mrb[0].mxu0
          %v1999 = vadd.f32 %v1570, %v1998
          %v2000 = vpop.f32.mrb[0].mxu0
          %v2001 = vpop.f32.mrb[0].mxu0
          %2002 = vdwg.mxu0
          %2003 = vmatprep.subr.bf16.mxu0 %v1867
          %2004 = vmatpush1.bf16.msra.mxu0 %v1866
          %2005 = vmatprep.subr.bf16.mxu0 %v1870
          %2006 = vmatpush1.bf16.msra.mxu0 %v1869
          %2007 = vmatprep.subr.bf16.mxu0 %v1873
          %2008 = vmatpush1.bf16.msra.mxu0 %v1872
          %2009 = vmatprep.subr.bf16.mxu0 %v1876
          %2010 = vmatpush1.bf16.msra.mxu0 %v1875
          %2011 = vmatprep.subr.bf16.mxu0 %v1879
          %2012 = vmatpush1.bf16.msra.mxu0 %v1878
          %2013 = vmatprep.subr.bf16.mxu0 %v1882
          %2014 = vmatpush1.bf16.msra.mxu0 %v1881
          %2015 = vmatprep.subr.bf16.mxu0 %v1885
          %2016 = vmatpush1.bf16.msra.mxu0 %v1884
          %2017 = vmatprep.subr.bf16.mxu0 %v1888
          %2018 = vmatpush1.bf16.msra.mxu0 %v1887
          %2019 = vmatprep.subr.bf16.mxu0 0
          %2020 = vmatpush1.bf16.msra.mxu0 0
          %2021 = vmatprep.subr.bf16.mxu0 0
          %2022 = vmatpush1.bf16.msra.mxu0 0
          %2023 = vmatprep.subr.bf16.mxu0 0
          %2024 = vmatpush1.bf16.msra.mxu0 0
          %2025 = vmatprep.subr.bf16.mxu0 0
          %2026 = vmatpush1.bf16.msra.mxu0 0
          %2027 = vmatprep.subr.bf16.mxu0 0
          %2028 = vmatpush1.bf16.msra.mxu0 0
          %2029 = vmatprep.subr.bf16.mxu0 0
          %2030 = vmatpush1.bf16.msra.mxu0 0
          %2031 = vmatprep.subr.bf16.mxu0 0
          %2032 = vmatpush1.bf16.msra.mxu0 0
          %2033 = vmatprep.subr.bf16.mxu0 0
          %2034 = vmatpush1.bf16.msra.mxu0 0
          %2035 = vmatprep.mubr.bf16.mxu0 0
          %2036 = vmatmul.mubr.bf16.gmra.mrb[0].mxu0 %v1464
          %v2037 = vpop.f32.mrb[0].mxu0
          %v2038 = vadd.f32 %v1997, %v2037
          %v2039 = vpop.f32.mrb[0].mxu0
          %v2040 = vadd.f32 %v1999, %v2039
          %v2041 = vpop.f32.mrb[0].mxu0
          %v2042 = vpop.f32.mrb[0].mxu0
          %2043 = vdwg.mxu0
          %2044 = vmatprep.subr.bf16.mxu0 0
          %2045 = vmatpush1.bf16.msra.mxu0 %v1820
          %2046 = vmatprep.subr.bf16.mxu0 0
          %2047 = vmatpush1.bf16.msra.mxu0 %v1823
          %2048 = vmatprep.subr.bf16.mxu0 0
          %2049 = vmatpush1.bf16.msra.mxu0 %v1826
          %2050 = vmatprep.subr.bf16.mxu0 0
          %2051 = vmatpush1.bf16.msra.mxu0 %v1829
          %2052 = vmatprep.subr.bf16.mxu0 0
          %2053 = vmatpush1.bf16.msra.mxu0 %v1832
          %2054 = vmatprep.subr.bf16.mxu0 0
          %2055 = vmatpush1.bf16.msra.mxu0 %v1835
          %2056 = vmatprep.subr.bf16.mxu0 0
          %2057 = vmatpush1.bf16.msra.mxu0 %v1838
          %2058 = vmatprep.subr.bf16.mxu0 0
          %2059 = vmatpush1.bf16.msra.mxu0 %v1841
          %2060 = vmatprep.subr.bf16.mxu0 0
          %2061 = vmatpush1.bf16.msra.mxu0 %v1844
          %2062 = vmatprep.subr.bf16.mxu0 0
          %2063 = vmatpush1.bf16.msra.mxu0 %v1847
          %2064 = vmatprep.subr.bf16.mxu0 0
          %2065 = vmatpush1.bf16.msra.mxu0 %v1850
          %2066 = vmatprep.subr.bf16.mxu0 0
          %2067 = vmatpush1.bf16.msra.mxu0 %v1853
          %2068 = vmatprep.subr.bf16.mxu0 0
          %2069 = vmatpush1.bf16.msra.mxu0 %v1856
          %2070 = vmatprep.subr.bf16.mxu0 0
          %2071 = vmatpush1.bf16.msra.mxu0 %v1859
          %2072 = vmatprep.subr.bf16.mxu0 0
          %2073 = vmatpush1.bf16.msra.mxu0 %v1862
          %2074 = vmatprep.subr.bf16.mxu0 0
          %2075 = vmatpush1.bf16.msra.mxu0 %v1865
          %2076 = vmatprep.mubr.bf16.mxu0 %v1463
          %2077 = vmatmul.mubr.bf16.gmra.mrb[0].mxu0 %v1462
          %v2078 = vpop.f32.mrb[0].mxu0
          %v2079 = vadd.f32 %v1574, %v2078
          %v2080 = vpop.f32.mrb[0].mxu0
          %v2081 = vpop.f32.mrb[0].mxu0
          %v2082 = vpop.f32.mrb[0].mxu0
          %2083 = vdwg.mxu0
          %2084 = vmatprep.subr.bf16.mxu0 0
          %2085 = vmatpush1.bf16.msra.mxu0 %v1868
          %2086 = vmatprep.subr.bf16.mxu0 0
          %2087 = vmatpush1.bf16.msra.mxu0 %v1871
          %2088 = vmatprep.subr.bf16.mxu0 0
          %2089 = vmatpush1.bf16.msra.mxu0 %v1874
          %2090 = vmatprep.subr.bf16.mxu0 0
          %2091 = vmatpush1.bf16.msra.mxu0 %v1877
          %2092 = vmatprep.subr.bf16.mxu0 0
          %2093 = vmatpush1.bf16.msra.mxu0 %v1880
          %2094 = vmatprep.subr.bf16.mxu0 0
          %2095 = vmatpush1.bf16.msra.mxu0 %v1883
          %2096 = vmatprep.subr.bf16.mxu0 0
          %2097 = vmatpush1.bf16.msra.mxu0 %v1886
          %2098 = vmatprep.subr.bf16.mxu0 0
          %2099 = vmatpush1.bf16.msra.mxu0 %v1889
          %2100 = vmatprep.subr.bf16.mxu0 0
          %2101 = vmatpush1.bf16.msra.mxu0 0
          %2102 = vmatprep.subr.bf16.mxu0 0
          %2103 = vmatpush1.bf16.msra.mxu0 0
          %2104 = vmatprep.subr.bf16.mxu0 0
          %2105 = vmatpush1.bf16.msra.mxu0 0
          %2106 = vmatprep.subr.bf16.mxu0 0
          %2107 = vmatpush1.bf16.msra.mxu0 0
          %2108 = vmatprep.subr.bf16.mxu0 0
          %2109 = vmatpush1.bf16.msra.mxu0 0
          %2110 = vmatprep.subr.bf16.mxu0 0
          %2111 = vmatpush1.bf16.msra.mxu0 0
          %2112 = vmatprep.subr.bf16.mxu0 0
          %2113 = vmatpush1.bf16.msra.mxu0 0
          %2114 = vmatprep.subr.bf16.mxu0 0
          %2115 = vmatpush1.bf16.msra.mxu0 0
          %2116 = vmatprep.mubr.bf16.mxu0 0
          %2117 = vmatmul.mubr.bf16.gmra.mrb[0].mxu0 %v1464
          %v2118 = vpop.f32.mrb[0].mxu0
          %v2119 = vadd.f32 %v2079, %v2118
          %v2120 = vpop.f32.mrb[0].mxu0
          %v2121 = vpop.f32.mrb[0].mxu0
          %v2122 = vpop.f32.mrb[0].mxu0
          %2123 = vdwg.mxu0
          %v2124 = vld [vmem:[%s8] sm:$0xff]
          %v2125 = vld [vmem:[%s8 + $0x8] sm:$0xf]
          %v2126 = vld [vmem:[%s8 + $0xc] sm:$0xff]
          %v2127 = vld [vmem:[%s8 + $0x14] sm:$0xf]
          %v2128 = vld [vmem:[%s8 + $0x18] sm:$0xff]
          %v2129 = vld [vmem:[%s8 + $0x20] sm:$0xf]
          %v2130 = vld [vmem:[%s8 + $0x24] sm:$0xff]
          %v2131 = vld [vmem:[%s8 + $0x2c] sm:$0xf]
          %v2132 = vld [vmem:[%s8 + $0x30] sm:$0xff]
          %v2133 = vld [vmem:[%s8 + $0x38] sm:$0xf]
          %v2134 = vld [vmem:[%s8 + $0x3c] sm:$0xff]
          %v2135 = vld [vmem:[%s8 + $0x44] sm:$0xf]
          %v2136 = vld [vmem:[%s8 + $0x48] sm:$0xff]
          %v2137 = vld [vmem:[%s8 + $0x50] sm:$0xf]
          %v2138 = vld [vmem:[%s8 + $0x54] sm:$0xff]
          %v2139 = vld [vmem:[%s8 + $0x5c] sm:$0xf]
          %v2140 = vld [vmem:[%s8 + $0x60] sm:$0xff]
          %v2141 = vld [vmem:[%s8 + $0x68] sm:$0xf]
          %v2142 = vld [vmem:[%s8 + $0x6c] sm:$0xff]
          %v2143 = vld [vmem:[%s8 + $0x74] sm:$0xf]
          %v2144 = vld [vmem:[%s8 + $0x78] sm:$0xff]
          %v2145 = vld [vmem:[%s8 + $0x80] sm:$0xf]
          %v2146 = vld [vmem:[%s8 + $0x84] sm:$0xff]
          %v2147 = vld [vmem:[%s8 + $0x8c] sm:$0xf]
          %v2148 = vld [vmem:[%s8 + $0x90] sm:$0xff]
          %v2149 = vld [vmem:[%s8 + $0x98] sm:$0xf]
          %v2150 = vld [vmem:[%s8 + $0x9c] sm:$0xff]
          %v2151 = vld [vmem:[%s8 + $0xa4] sm:$0xf]
          %v2152 = vld [vmem:[%s8 + $0xa8] sm:$0xff]
          %v2153 = vld [vmem:[%s8 + $0xb0] sm:$0xf]
          %v2154 = vld [vmem:[%s8 + $0xb4] sm:$0xff]
          %v2155 = vld [vmem:[%s8 + $0xbc] sm:$0xf]
          %v2188 = vunpack.c.l.b16 %v2124
          %v2189 = vunpack.c.h.b16 %v2124
          %v2190 = vunpack.c.l.b16 %v2125
          %v2191 = vunpack.c.l.b16 %v2126
          %v2192 = vunpack.c.h.b16 %v2126
          %v2193 = vunpack.c.l.b16 %v2127
          %v2194 = vunpack.c.l.b16 %v2128
          %v2195 = vunpack.c.h.b16 %v2128
          %v2196 = vunpack.c.l.b16 %v2129
          %v2197 = vunpack.c.l.b16 %v2130
          %v2198 = vunpack.c.h.b16 %v2130
          %v2199 = vunpack.c.l.b16 %v2131
          %v2200 = vunpack.c.l.b16 %v2132
          %v2201 = vunpack.c.h.b16 %v2132
          %v2202 = vunpack.c.l.b16 %v2133
          %v2203 = vunpack.c.l.b16 %v2134
          %v2204 = vunpack.c.h.b16 %v2134
          %v2205 = vunpack.c.l.b16 %v2135
          %v2206 = vunpack.c.l.b16 %v2136
          %v2207 = vunpack.c.h.b16 %v2136
          %v2208 = vunpack.c.l.b16 %v2137
          %v2209 = vunpack.c.l.b16 %v2138
          %v2210 = vunpack.c.h.b16 %v2138
          %v2211 = vunpack.c.l.b16 %v2139
          %v2212 = vunpack.c.l.b16 %v2140
          %v2213 = vunpack.c.h.b16 %v2140
          %v2214 = vunpack.c.l.b16 %v2141
          %v2215 = vunpack.c.l.b16 %v2142
          %v2216 = vunpack.c.h.b16 %v2142
          %v2217 = vunpack.c.l.b16 %v2143
          %v2218 = vunpack.c.l.b16 %v2144
          %v2219 = vunpack.c.h.b16 %v2144
          %v2220 = vunpack.c.l.b16 %v2145
          %v2221 = vunpack.c.l.b16 %v2146
          %v2222 = vunpack.c.h.b16 %v2146
          %v2223 = vunpack.c.l.b16 %v2147
          %v2224 = vunpack.c.l.b16 %v2148
          %v2225 = vunpack.c.h.b16 %v2148
          %v2226 = vunpack.c.l.b16 %v2149
          %v2227 = vunpack.c.l.b16 %v2150
          %v2228 = vunpack.c.h.b16 %v2150
          %v2229 = vunpack.c.l.b16 %v2151
          %v2230 = vunpack.c.l.b16 %v2152
          %v2231 = vunpack.c.h.b16 %v2152
          %v2232 = vunpack.c.l.b16 %v2153
          %v2233 = vunpack.c.l.b16 %v2154
          %v2234 = vunpack.c.h.b16 %v2154
          %v2235 = vunpack.c.l.b16 %v2155
          %v2236 = vpack.c.b16 %v2191, %v2188
          %v2237 = vpack.c.b16 %v2192, %v2189
          %v2238 = vpack.c.b16 %v2193, %v2190
          %v2239 = vpack.c.b16 %v2197, %v2194
          %v2240 = vpack.c.b16 %v2198, %v2195
          %v2241 = vpack.c.b16 %v2199, %v2196
          %v2242 = vpack.c.b16 %v2203, %v2200
          %v2243 = vpack.c.b16 %v2204, %v2201
          %v2244 = vpack.c.b16 %v2205, %v2202
          %v2245 = vpack.c.b16 %v2209, %v2206
          %v2246 = vpack.c.b16 %v2210, %v2207
          %v2247 = vpack.c.b16 %v2211, %v2208
          %v2248 = vpack.c.b16 %v2215, %v2212
          %v2249 = vpack.c.b16 %v2216, %v2213
          %v2250 = vpack.c.b16 %v2217, %v2214
          %v2251 = vpack.c.b16 %v2221, %v2218
          %v2252 = vpack.c.b16 %v2222, %v2219
          %v2253 = vpack.c.b16 %v2223, %v2220
          %v2254 = vpack.c.b16 %v2227, %v2224
          %v2255 = vpack.c.b16 %v2228, %v2225
          %v2256 = vpack.c.b16 %v2229, %v2226
          %v2257 = vpack.c.b16 %v2233, %v2230
          %v2258 = vpack.c.b16 %v2234, %v2231
          %v2259 = vpack.c.b16 %v2235, %v2232
          %2284 = vmatprep.subr.bf16.mxu0 %v2237
          %2285 = vmatpush1.bf16.msra.mxu0 %v2236
          %2286 = vmatprep.subr.bf16.mxu0 %v2240
          %2287 = vmatpush1.bf16.msra.mxu0 %v2239
          %2288 = vmatprep.subr.bf16.mxu0 %v2243
          %2289 = vmatpush1.bf16.msra.mxu0 %v2242
          %2290 = vmatprep.subr.bf16.mxu0 %v2246
          %2291 = vmatpush1.bf16.msra.mxu0 %v2245
          %2292 = vmatprep.subr.bf16.mxu0 %v2249
          %2293 = vmatpush1.bf16.msra.mxu0 %v2248
          %2294 = vmatprep.subr.bf16.mxu0 %v2252
          %2295 = vmatpush1.bf16.msra.mxu0 %v2251
          %2296 = vmatprep.subr.bf16.mxu0 %v2255
          %2297 = vmatpush1.bf16.msra.mxu0 %v2254
          %2298 = vmatprep.subr.bf16.mxu0 %v2258
          %2299 = vmatpush1.bf16.msra.mxu0 %v2257
          %2300 = vmatprep.subr.bf16.mxu0 0
          %2301 = vmatpush1.bf16.msra.mxu0 0
          %2302 = vmatprep.subr.bf16.mxu0 0
          %2303 = vmatpush1.bf16.msra.mxu0 0
          %2304 = vmatprep.subr.bf16.mxu0 0
          %2305 = vmatpush1.bf16.msra.mxu0 0
          %2306 = vmatprep.subr.bf16.mxu0 0
          %2307 = vmatpush1.bf16.msra.mxu0 0
          %2308 = vmatprep.subr.bf16.mxu0 0
          %2309 = vmatpush1.bf16.msra.mxu0 0
          %2310 = vmatprep.subr.bf16.mxu0 0
          %2311 = vmatpush1.bf16.msra.mxu0 0
          %2312 = vmatprep.subr.bf16.mxu0 0
          %2313 = vmatpush1.bf16.msra.mxu0 0
          %2314 = vmatprep.subr.bf16.mxu0 0
          %2315 = vmatpush1.bf16.msra.mxu0 0
          %2316 = vmatprep.mubr.bf16.mxu0 0
          %2317 = vmatmul.mubr.bf16.gmra.mrb[0].mxu0 %v778
          %v2318 = vpop.f32.mrb[0].mxu0
          %v2319 = vadd.f32 0.0, %v2318
          %v2320 = vpop.f32.mrb[0].mxu0
          %v2321 = vadd.f32 0.0, %v2320
          %v2322 = vpop.f32.mrb[0].mxu0
          %v2323 = vpop.f32.mrb[0].mxu0
          %2324 = vdwg.mxu0
          %2325 = vmatprep.subr.bf16.mxu0 0
          %2326 = vmatpush1.bf16.msra.mxu0 %v2238
          %2327 = vmatprep.subr.bf16.mxu0 0
          %2328 = vmatpush1.bf16.msra.mxu0 %v2241
          %2329 = vmatprep.subr.bf16.mxu0 0
          %2330 = vmatpush1.bf16.msra.mxu0 %v2244
          %2331 = vmatprep.subr.bf16.mxu0 0
          %2332 = vmatpush1.bf16.msra.mxu0 %v2247
          %2333 = vmatprep.subr.bf16.mxu0 0
          %2334 = vmatpush1.bf16.msra.mxu0 %v2250
          %2335 = vmatprep.subr.bf16.mxu0 0
          %2336 = vmatpush1.bf16.msra.mxu0 %v2253
          %2337 = vmatprep.subr.bf16.mxu0 0
          %2338 = vmatpush1.bf16.msra.mxu0 %v2256
          %2339 = vmatprep.subr.bf16.mxu0 0
          %2340 = vmatpush1.bf16.msra.mxu0 %v2259
          %2341 = vmatprep.subr.bf16.mxu0 0
          %2342 = vmatpush1.bf16.msra.mxu0 0
          %2343 = vmatprep.subr.bf16.mxu0 0
          %2344 = vmatpush1.bf16.msra.mxu0 0
          %2345 = vmatprep.subr.bf16.mxu0 0
          %2346 = vmatpush1.bf16.msra.mxu0 0
          %2347 = vmatprep.subr.bf16.mxu0 0
          %2348 = vmatpush1.bf16.msra.mxu0 0
          %2349 = vmatprep.subr.bf16.mxu0 0
          %2350 = vmatpush1.bf16.msra.mxu0 0
          %2351 = vmatprep.subr.bf16.mxu0 0
          %2352 = vmatpush1.bf16.msra.mxu0 0
          %2353 = vmatprep.subr.bf16.mxu0 0
          %2354 = vmatpush1.bf16.msra.mxu0 0
          %2355 = vmatprep.subr.bf16.mxu0 0
          %2356 = vmatpush1.bf16.msra.mxu0 0
          %2357 = vmatprep.mubr.bf16.mxu0 0
          %2358 = vmatmul.mubr.bf16.gmra.mrb[0].mxu0 %v778
          %v2359 = vpop.f32.mrb[0].mxu0
          %v2360 = vadd.f32 0.0, %v2359
          %v2361 = vpop.f32.mrb[0].mxu0
          %v2362 = vpop.f32.mrb[0].mxu0
          %v2363 = vpop.f32.mrb[0].mxu0
          %2364 = vdwg.mxu0
          %v2365 = vadd.f32 %v2038, %v2319
          %v2366 = vxor.u32 %v2365, 2147483648
          %v2367 = vmul.f32 %v2366, 1.442695
          %v2368 = vpow.pop %v2367
          %v2369 = vadd.f32 %v2368, 1.0
          %v2370 = vrcp.pop %v2369
          %v2371 = vmul.f32 1.0, %v2370
          %v2372 = vadd.f32 %v2040, %v2321
          %v2373 = vxor.u32 %v2372, 2147483648
          %v2374 = vmul.f32 %v2373, 1.442695
          %v2375 = vpow.pop %v2374
          %v2376 = vadd.f32 %v2375, 1.0
          %v2377 = vrcp.pop %v2376
          %v2378 = vmul.f32 1.0, %v2377
          %v2379 = vld [vmem:[%s9] sm:$0x1]
          %v2381 = vlaneseq
          %v2382 = vshrl.u32 %v2381, 7
          %v2383 = vsub.s32 0, %v2382
          %v2384 = vrot.slane %v2379, %v2383
          %v2386 = vadd.f32 %v2360, %v2384
          %v2387 = vmul.f32 %v2371, %v2386
          %v2388 = vadd.f32 %v2119, %v2387
          %v2389 = vtanh.pop %v2388
          %v2390 = vsub.f32 1.0, %v2378
          %v2391 = vmul.f32 %v2390, %v2389
          %v2392 = vmul.f32 %v2378, %v753
          %v2393 = vadd.f32 %v2391, %v2392
          %2394 = vst [vmem:[%s13] sm:$0xff] %v2393
          %v2395 = vpack.c.bf16 %v2393, %v2393
          %v2400 = vunpack.c.l.b16 %v2395
          %v2401 = vunpack.c.l.b16 %v1463
          %v2402 = vunpack.c.l.b16 %v1464
          %v2403 = vunpack.c.l.b16 %v1462
          %v2404 = vpack.c.b16 %v2401, %v2400
          %v2405 = vpack.c.b16 %v2403, %v2402
          %2408 = vst [vmem:[#allocation2] sm:$0xff] %v2404
          %2409 = vst [vmem:[#allocation2 + $0x8] sm:$0xff] %v2405
        $region110: #{step.1} parent=101 // pred_fallthru
          _
        %v2410 = vld [vmem:[#allocation2] sm:$0xff]
        %v2411 = vld [vmem:[#allocation2 + $0x8] sm:$0xff]
        %v2412 = vld [vmem:[%s690] sm:$0xff]
        %v2413 = vld [vmem:[%s690 + $0x8] sm:$0xff]
        %v2414 = vld [vmem:[%s690 + $0x10] sm:$0xff]
        %v2415 = vld [vmem:[%s690 + $0x18] sm:$0xff]
        %v2416 = vld [vmem:[%s690 + $0x20] sm:$0xff]
        %v2417 = vld [vmem:[%s690 + $0x28] sm:$0xff]
        %v2418 = vld [vmem:[%s690 + $0x30] sm:$0xff]
        %v2419 = vld [vmem:[%s690 + $0x38] sm:$0xff]
        %v2420 = vld [vmem:[%s690 + $0x40] sm:$0xff]
        %v2421 = vld [vmem:[%s690 + $0x48] sm:$0xff]
        %v2422 = vld [vmem:[%s690 + $0x50] sm:$0xff]
        %v2423 = vld [vmem:[%s690 + $0x58] sm:$0xff]
        %v2424 = vld [vmem:[%s690 + $0x60] sm:$0xff]
        %v2425 = vld [vmem:[%s690 + $0x68] sm:$0xff]
        %v2426 = vld [vmem:[%s690 + $0x70] sm:$0xff]
        %v2427 = vld [vmem:[%s690 + $0x78] sm:$0xff]
        %v2428 = vld [vmem:[%s690 + $0x80] sm:$0xff]
        %v2429 = vld [vmem:[%s690 + $0x88] sm:$0xff]
        %v2430 = vld [vmem:[%s690 + $0x90] sm:$0xff]
        %v2431 = vld [vmem:[%s690 + $0x98] sm:$0xff]
        %v2432 = vld [vmem:[%s690 + $0xa0] sm:$0xff]
        %v2433 = vld [vmem:[%s690 + $0xa8] sm:$0xff]
        %v2434 = vld [vmem:[%s690 + $0xb0] sm:$0xff]
        %v2435 = vld [vmem:[%s690 + $0xb8] sm:$0xff]
        %v2436 = vld [vmem:[%s690 + $0xc0] sm:$0xff]
        %v2437 = vld [vmem:[%s690 + $0xc8] sm:$0xff]
        %v2438 = vld [vmem:[%s690 + $0xd0] sm:$0xff]
        %v2439 = vld [vmem:[%s690 + $0xd8] sm:$0xff]
        %v2440 = vld [vmem:[%s690 + $0xe0] sm:$0xff]
        %v2441 = vld [vmem:[%s690 + $0xe8] sm:$0xff]
        %v2442 = vld [vmem:[%s690 + $0xf0] sm:$0xff]
        %v2443 = vld [vmem:[%s690 + $0xf8] sm:$0xff]
        %v2444 = vld [vmem:[%s690 + $0x100] sm:$0xff]
        %v2445 = vld [vmem:[%s690 + $0x108] sm:$0xff]
        %v2446 = vld [vmem:[%s690 + $0x110] sm:$0xff]
        %v2447 = vld [vmem:[%s690 + $0x118] sm:$0xff]
        %v2448 = vld [vmem:[%s690 + $0x120] sm:$0xff]
        %v2449 = vld [vmem:[%s690 + $0x128] sm:$0xff]
        %v2450 = vld [vmem:[%s690 + $0x130] sm:$0xff]
        %v2451 = vld [vmem:[%s690 + $0x138] sm:$0xff]
        %v2452 = vld [vmem:[%s690 + $0x140] sm:$0xff]
        %v2453 = vld [vmem:[%s690 + $0x148] sm:$0xff]
        %v2454 = vld [vmem:[%s690 + $0x150] sm:$0xff]
        %v2455 = vld [vmem:[%s690 + $0x158] sm:$0xff]
        %v2456 = vld [vmem:[%s690 + $0x160] sm:$0xff]
        %v2457 = vld [vmem:[%s690 + $0x168] sm:$0xff]
        %v2458 = vld [vmem:[%s690 + $0x170] sm:$0xff]
        %v2459 = vld [vmem:[%s690 + $0x178] sm:$0xff]
        %v2460 = vld [vmem:[%s690 + $0x180] sm:$0xff]
        %v2461 = vld [vmem:[%s690 + $0x188] sm:$0xff]
        %v2462 = vld [vmem:[%s690 + $0x190] sm:$0xff]
        %v2463 = vld [vmem:[%s690 + $0x198] sm:$0xff]
        %v2464 = vld [vmem:[%s690 + $0x1a0] sm:$0xff]
        %v2465 = vld [vmem:[%s690 + $0x1a8] sm:$0xff]
        %v2466 = vld [vmem:[%s690 + $0x1b0] sm:$0xff]
        %v2467 = vld [vmem:[%s690 + $0x1b8] sm:$0xff]
        %v2468 = vld [vmem:[%s690 + $0x1c0] sm:$0xff]
        %v2469 = vld [vmem:[%s690 + $0x1c8] sm:$0xff]
        %v2470 = vld [vmem:[%s690 + $0x1d0] sm:$0xff]
        %v2471 = vld [vmem:[%s690 + $0x1d8] sm:$0xff]
        %v2472 = vld [vmem:[%s690 + $0x1e0] sm:$0xff]
        %v2473 = vld [vmem:[%s690 + $0x1e8] sm:$0xff]
        %v2474 = vld [vmem:[%s690 + $0x1f0] sm:$0xff]
        %v2475 = vld [vmem:[%s690 + $0x1f8] sm:$0xff]
        %v2476 = vld [vmem:[%s739] sm:$0x3]
        %v2478 = vlaneseq
        %v2479 = vshrl.u32 %v2478, 7
        %v2480 = vsub.s32 0, %v2479
        %v2481 = vrot.slane %v2476, %v2480
        %v2482 = vlaneseq
        %v2483 = vshrl.u32 %v2482, 7
        %v2484 = vsub.s32 1, %v2483
        %v2485 = vrot.slane %v2476, %v2484
        %v2490 = vunpack.c.l.b16 %v2410
        %v2491 = vunpack.c.h.b16 %v2410
        %v2492 = vunpack.c.l.b16 %v2411
        %v2493 = vunpack.c.h.b16 %v2411
        %v2494 = vpack.c.b16 %v2490, %v2490
        %v2495 = vpack.c.b16 %v2491, %v2491
        %v2496 = vpack.c.b16 %v2492, %v2492
        %v2497 = vpack.c.b16 %v2493, %v2493
        %v2566 = vunpack.c.l.b16 %v2412
        %v2567 = vunpack.c.h.b16 %v2412
        %v2568 = vunpack.c.l.b16 %v2413
        %v2569 = vunpack.c.h.b16 %v2413
        %v2570 = vunpack.c.l.b16 %v2414
        %v2571 = vunpack.c.h.b16 %v2414
        %v2572 = vunpack.c.l.b16 %v2415
        %v2573 = vunpack.c.h.b16 %v2415
        %v2574 = vunpack.c.l.b16 %v2416
        %v2575 = vunpack.c.h.b16 %v2416
        %v2576 = vunpack.c.l.b16 %v2417
        %v2577 = vunpack.c.h.b16 %v2417
        %v2578 = vunpack.c.l.b16 %v2418
        %v2579 = vunpack.c.h.b16 %v2418
        %v2580 = vunpack.c.l.b16 %v2419
        %v2581 = vunpack.c.h.b16 %v2419
        %v2582 = vunpack.c.l.b16 %v2420
        %v2583 = vunpack.c.h.b16 %v2420
        %v2584 = vunpack.c.l.b16 %v2421
        %v2585 = vunpack.c.h.b16 %v2421
        %v2586 = vunpack.c.l.b16 %v2422
        %v2587 = vunpack.c.h.b16 %v2422
        %v2588 = vunpack.c.l.b16 %v2423
        %v2589 = vunpack.c.h.b16 %v2423
        %v2590 = vunpack.c.l.b16 %v2424
        %v2591 = vunpack.c.h.b16 %v2424
        %v2592 = vunpack.c.l.b16 %v2425
        %v2593 = vunpack.c.h.b16 %v2425
        %v2594 = vunpack.c.l.b16 %v2426
        %v2595 = vunpack.c.h.b16 %v2426
        %v2596 = vunpack.c.l.b16 %v2427
        %v2597 = vunpack.c.h.b16 %v2427
        %v2598 = vunpack.c.l.b16 %v2428
        %v2599 = vunpack.c.h.b16 %v2428
        %v2600 = vunpack.c.l.b16 %v2429
        %v2601 = vunpack.c.h.b16 %v2429
        %v2602 = vunpack.c.l.b16 %v2430
        %v2603 = vunpack.c.h.b16 %v2430
        %v2604 = vunpack.c.l.b16 %v2431
        %v2605 = vunpack.c.h.b16 %v2431
        %v2606 = vunpack.c.l.b16 %v2432
        %v2607 = vunpack.c.h.b16 %v2432
        %v2608 = vunpack.c.l.b16 %v2433
        %v2609 = vunpack.c.h.b16 %v2433
        %v2610 = vunpack.c.l.b16 %v2434
        %v2611 = vunpack.c.h.b16 %v2434
        %v2612 = vunpack.c.l.b16 %v2435
        %v2613 = vunpack.c.h.b16 %v2435
        %v2614 = vunpack.c.l.b16 %v2436
        %v2615 = vunpack.c.h.b16 %v2436
        %v2616 = vunpack.c.l.b16 %v2437
        %v2617 = vunpack.c.h.b16 %v2437
        %v2618 = vunpack.c.l.b16 %v2438
        %v2619 = vunpack.c.h.b16 %v2438
        %v2620 = vunpack.c.l.b16 %v2439
        %v2621 = vunpack.c.h.b16 %v2439
        %v2622 = vunpack.c.l.b16 %v2440
        %v2623 = vunpack.c.h.b16 %v2440
        %v2624 = vunpack.c.l.b16 %v2441
        %v2625 = vunpack.c.h.b16 %v2441
        %v2626 = vunpack.c.l.b16 %v2442
        %v2627 = vunpack.c.h.b16 %v2442
        %v2628 = vunpack.c.l.b16 %v2443
        %v2629 = vunpack.c.h.b16 %v2443
        %v2630 = vunpack.c.l.b16 %v2444
        %v2631 = vunpack.c.h.b16 %v2444
        %v2632 = vunpack.c.l.b16 %v2445
        %v2633 = vunpack.c.h.b16 %v2445
        %v2634 = vunpack.c.l.b16 %v2446
        %v2635 = vunpack.c.h.b16 %v2446
        %v2636 = vunpack.c.l.b16 %v2447
        %v2637 = vunpack.c.h.b16 %v2447
        %v2638 = vunpack.c.l.b16 %v2448
        %v2639 = vunpack.c.h.b16 %v2448
        %v2640 = vunpack.c.l.b16 %v2449
        %v2641 = vunpack.c.h.b16 %v2449
        %v2642 = vunpack.c.l.b16 %v2450
        %v2643 = vunpack.c.h.b16 %v2450
        %v2644 = vunpack.c.l.b16 %v2451
        %v2645 = vunpack.c.h.b16 %v2451
        %v2646 = vunpack.c.l.b16 %v2452
        %v2647 = vunpack.c.h.b16 %v2452
        %v2648 = vunpack.c.l.b16 %v2453
        %v2649 = vunpack.c.h.b16 %v2453
        %v2650 = vunpack.c.l.b16 %v2454
        %v2651 = vunpack.c.h.b16 %v2454
        %v2652 = vunpack.c.l.b16 %v2455
        %v2653 = vunpack.c.h.b16 %v2455
        %v2654 = vunpack.c.l.b16 %v2456
        %v2655 = vunpack.c.h.b16 %v2456
        %v2656 = vunpack.c.l.b16 %v2457
        %v2657 = vunpack.c.h.b16 %v2457
        %v2658 = vunpack.c.l.b16 %v2458
        %v2659 = vunpack.c.h.b16 %v2458
        %v2660 = vunpack.c.l.b16 %v2459
        %v2661 = vunpack.c.h.b16 %v2459
        %v2662 = vunpack.c.l.b16 %v2460
        %v2663 = vunpack.c.h.b16 %v2460
        %v2664 = vunpack.c.l.b16 %v2461
        %v2665 = vunpack.c.h.b16 %v2461
        %v2666 = vunpack.c.l.b16 %v2462
        %v2667 = vunpack.c.h.b16 %v2462
        %v2668 = vunpack.c.l.b16 %v2463
        %v2669 = vunpack.c.h.b16 %v2463
        %v2670 = vunpack.c.l.b16 %v2464
        %v2671 = vunpack.c.h.b16 %v2464
        %v2672 = vunpack.c.l.b16 %v2465
        %v2673 = vunpack.c.h.b16 %v2465
        %v2674 = vunpack.c.l.b16 %v2466
        %v2675 = vunpack.c.h.b16 %v2466
        %v2676 = vunpack.c.l.b16 %v2467
        %v2677 = vunpack.c.h.b16 %v2467
        %v2678 = vunpack.c.l.b16 %v2468
        %v2679 = vunpack.c.h.b16 %v2468
        %v2680 = vunpack.c.l.b16 %v2469
        %v2681 = vunpack.c.h.b16 %v2469
        %v2682 = vunpack.c.l.b16 %v2470
        %v2683 = vunpack.c.h.b16 %v2470
        %v2684 = vunpack.c.l.b16 %v2471
        %v2685 = vunpack.c.h.b16 %v2471
        %v2686 = vunpack.c.l.b16 %v2472
        %v2687 = vunpack.c.h.b16 %v2472
        %v2688 = vunpack.c.l.b16 %v2473
        %v2689 = vunpack.c.h.b16 %v2473
        %v2690 = vunpack.c.l.b16 %v2474
        %v2691 = vunpack.c.h.b16 %v2474
        %v2692 = vunpack.c.l.b16 %v2475
        %v2693 = vunpack.c.h.b16 %v2475
        %v2694 = vpack.c.b16 %v2568, %v2566
        %v2695 = vpack.c.b16 %v2569, %v2567
        %v2696 = vpack.c.b16 %v2572, %v2570
        %v2697 = vpack.c.b16 %v2573, %v2571
        %v2698 = vpack.c.b16 %v2576, %v2574
        %v2699 = vpack.c.b16 %v2577, %v2575
        %v2700 = vpack.c.b16 %v2580, %v2578
        %v2701 = vpack.c.b16 %v2581, %v2579
        %v2702 = vpack.c.b16 %v2584, %v2582
        %v2703 = vpack.c.b16 %v2585, %v2583
        %v2704 = vpack.c.b16 %v2588, %v2586
        %v2705 = vpack.c.b16 %v2589, %v2587
        %v2706 = vpack.c.b16 %v2592, %v2590
        %v2707 = vpack.c.b16 %v2593, %v2591
        %v2708 = vpack.c.b16 %v2596, %v2594
        %v2709 = vpack.c.b16 %v2597, %v2595
        %v2710 = vpack.c.b16 %v2600, %v2598
        %v2711 = vpack.c.b16 %v2601, %v2599
        %v2712 = vpack.c.b16 %v2604, %v2602
        %v2713 = vpack.c.b16 %v2605, %v2603
        %v2714 = vpack.c.b16 %v2608, %v2606
        %v2715 = vpack.c.b16 %v2609, %v2607
        %v2716 = vpack.c.b16 %v2612, %v2610
        %v2717 = vpack.c.b16 %v2613, %v2611
        %v2718 = vpack.c.b16 %v2616, %v2614
        %v2719 = vpack.c.b16 %v2617, %v2615
        %v2720 = vpack.c.b16 %v2620, %v2618
        %v2721 = vpack.c.b16 %v2621, %v2619
        %v2722 = vpack.c.b16 %v2624, %v2622
        %v2723 = vpack.c.b16 %v2625, %v2623
        %v2724 = vpack.c.b16 %v2628, %v2626
        %v2725 = vpack.c.b16 %v2629, %v2627
        %v2726 = vpack.c.b16 %v2632, %v2630
        %v2727 = vpack.c.b16 %v2633, %v2631
        %v2728 = vpack.c.b16 %v2636, %v2634
        %v2729 = vpack.c.b16 %v2637, %v2635
        %v2730 = vpack.c.b16 %v2640, %v2638
        %v2731 = vpack.c.b16 %v2641, %v2639
        %v2732 = vpack.c.b16 %v2644, %v2642
        %v2733 = vpack.c.b16 %v2645, %v2643
        %v2734 = vpack.c.b16 %v2648, %v2646
        %v2735 = vpack.c.b16 %v2649, %v2647
        %v2736 = vpack.c.b16 %v2652, %v2650
        %v2737 = vpack.c.b16 %v2653, %v2651
        %v2738 = vpack.c.b16 %v2656, %v2654
        %v2739 = vpack.c.b16 %v2657, %v2655
        %v2740 = vpack.c.b16 %v2660, %v2658
        %v2741 = vpack.c.b16 %v2661, %v2659
        %v2742 = vpack.c.b16 %v2664, %v2662
        %v2743 = vpack.c.b16 %v2665, %v2663
        %v2744 = vpack.c.b16 %v2668, %v2666
        %v2745 = vpack.c.b16 %v2669, %v2667
        %v2746 = vpack.c.b16 %v2672, %v2670
        %v2747 = vpack.c.b16 %v2673, %v2671
        %v2748 = vpack.c.b16 %v2676, %v2674
        %v2749 = vpack.c.b16 %v2677, %v2675
        %v2750 = vpack.c.b16 %v2680, %v2678
        %v2751 = vpack.c.b16 %v2681, %v2679
        %v2752 = vpack.c.b16 %v2684, %v2682
        %v2753 = vpack.c.b16 %v2685, %v2683
        %v2754 = vpack.c.b16 %v2688, %v2686
        %v2755 = vpack.c.b16 %v2689, %v2687
        %v2756 = vpack.c.b16 %v2692, %v2690
        %v2757 = vpack.c.b16 %v2693, %v2691
        %2822 = vmatprep.subr.bf16.mxu0 %v2695
        %2823 = vmatpush1.bf16.msra.mxu0 %v2694
        %2824 = vmatprep.subr.bf16.mxu0 %v2697
        %2825 = vmatpush1.bf16.msra.mxu0 %v2696
        %2826 = vmatprep.subr.bf16.mxu0 %v2699
        %2827 = vmatpush1.bf16.msra.mxu0 %v2698
        %2828 = vmatprep.subr.bf16.mxu0 %v2701
        %2829 = vmatpush1.bf16.msra.mxu0 %v2700
        %2830 = vmatprep.subr.bf16.mxu0 %v2703
        %2831 = vmatpush1.bf16.msra.mxu0 %v2702
        %2832 = vmatprep.subr.bf16.mxu0 %v2705
        %2833 = vmatpush1.bf16.msra.mxu0 %v2704
        %2834 = vmatprep.subr.bf16.mxu0 %v2707
        %2835 = vmatpush1.bf16.msra.mxu0 %v2706
        %2836 = vmatprep.subr.bf16.mxu0 %v2709
        %2837 = vmatpush1.bf16.msra.mxu0 %v2708
        %2838 = vmatprep.subr.bf16.mxu0 %v2711
        %2839 = vmatpush1.bf16.msra.mxu0 %v2710
        %2840 = vmatprep.subr.bf16.mxu0 %v2713
        %2841 = vmatpush1.bf16.msra.mxu0 %v2712
        %2842 = vmatprep.subr.bf16.mxu0 %v2715
        %2843 = vmatpush1.bf16.msra.mxu0 %v2714
        %2844 = vmatprep.subr.bf16.mxu0 %v2717
        %2845 = vmatpush1.bf16.msra.mxu0 %v2716
        %2846 = vmatprep.subr.bf16.mxu0 %v2719
        %2847 = vmatpush1.bf16.msra.mxu0 %v2718
        %2848 = vmatprep.subr.bf16.mxu0 %v2721
        %2849 = vmatpush1.bf16.msra.mxu0 %v2720
        %2850 = vmatprep.subr.bf16.mxu0 %v2723
        %2851 = vmatpush1.bf16.msra.mxu0 %v2722
        %2852 = vmatprep.subr.bf16.mxu0 %v2725
        %2853 = vmatpush1.bf16.msra.mxu0 %v2724
        %2854 = vmatprep.mubr.bf16.mxu0 %v2495
        %2855 = vmatmul.mubr.bf16.gmra.mrb[0].mxu0 %v2494
        %v2856 = vpop.f32.mrb[0].mxu0
        %v2857 = vadd.f32 %v2481, %v2856
        %v2858 = vpop.f32.mrb[0].mxu0
        %v2859 = vadd.f32 %v2485, %v2858
        %v2860 = vpop.f32.mrb[0].mxu0
        %v2861 = vpop.f32.mrb[0].mxu0
        %2862 = vdwg.mxu0
        %2863 = vmatprep.subr.bf16.mxu0 %v2727
        %2864 = vmatpush1.bf16.msra.mxu0 %v2726
        %2865 = vmatprep.subr.bf16.mxu0 %v2729
        %2866 = vmatpush1.bf16.msra.mxu0 %v2728
        %2867 = vmatprep.subr.bf16.mxu0 %v2731
        %2868 = vmatpush1.bf16.msra.mxu0 %v2730
        %2869 = vmatprep.subr.bf16.mxu0 %v2733
        %2870 = vmatpush1.bf16.msra.mxu0 %v2732
        %2871 = vmatprep.subr.bf16.mxu0 %v2735
        %2872 = vmatpush1.bf16.msra.mxu0 %v2734
        %2873 = vmatprep.subr.bf16.mxu0 %v2737
        %2874 = vmatpush1.bf16.msra.mxu0 %v2736
        %2875 = vmatprep.subr.bf16.mxu0 %v2739
        %2876 = vmatpush1.bf16.msra.mxu0 %v2738
        %2877 = vmatprep.subr.bf16.mxu0 %v2741
        %2878 = vmatpush1.bf16.msra.mxu0 %v2740
        %2879 = vmatprep.subr.bf16.mxu0 %v2743
        %2880 = vmatpush1.bf16.msra.mxu0 %v2742
        %2881 = vmatprep.subr.bf16.mxu0 %v2745
        %2882 = vmatpush1.bf16.msra.mxu0 %v2744
        %2883 = vmatprep.subr.bf16.mxu0 %v2747
        %2884 = vmatpush1.bf16.msra.mxu0 %v2746
        %2885 = vmatprep.subr.bf16.mxu0 %v2749
        %2886 = vmatpush1.bf16.msra.mxu0 %v2748
        %2887 = vmatprep.subr.bf16.mxu0 %v2751
        %2888 = vmatpush1.bf16.msra.mxu0 %v2750
        %2889 = vmatprep.subr.bf16.mxu0 %v2753
        %2890 = vmatpush1.bf16.msra.mxu0 %v2752
        %2891 = vmatprep.subr.bf16.mxu0 %v2755
        %2892 = vmatpush1.bf16.msra.mxu0 %v2754
        %2893 = vmatprep.subr.bf16.mxu0 %v2757
        %2894 = vmatpush1.bf16.msra.mxu0 %v2756
        %2895 = vmatprep.mubr.bf16.mxu0 %v2497
        %2896 = vmatmul.mubr.bf16.gmra.mrb[0].mxu0 %v2496
        %v2897 = vpop.f32.mrb[0].mxu0
        %v2898 = vadd.f32 %v2857, %v2897
        %v2899 = vpop.f32.mrb[0].mxu0
        %v2900 = vadd.f32 %v2859, %v2899
        %v2901 = vpop.f32.mrb[0].mxu0
        %v2902 = vpop.f32.mrb[0].mxu0
        %2903 = vdwg.mxu0
        %2904 = vst [vmem:[%s745] sm:$0xff] %v2898
        %2905 = vst [vmem:[%s745 + $0x8] sm:$0xff] %v2900
        %s2906 = smul.u32 2, %s25
        %p2907 = scmp.lt.s32.totalorder %s2906, 3
        %s2908 = scalar_select %p2907, %s2906, 3
        %s2909 = smul.addr %s2908, 8
        %s2910 = scalar_lea.vmem %s12, %s2909
        // Predicated region
        $region111: #{step.1} parent=101 // pred_check
          %p2911 = pneg %p305
        $region112: #{step.1} parent=101 // pred_check_branch
          %2913 = sbr.rel (%p2911) target = $region114
        $region113: #{step.1} parent=101 // pred_region
          %s2914 = smul.u32 2, %s25
        $region114: #{step.1} parent=101 // pred_fallthru
          _
        // Predicated region
        $region115: #{step.1} parent=101 // pred_check
          %p2915 = pneg %p326
        $region116: #{step.1} parent=101 // pred_check_branch
          %2917 = sbr.rel (%p2915) target = $region118
        $region117: #{step.1} parent=101 // pred_region
          _
        $region118: #{step.1} parent=101 // pred_fallthru
          _
        // Predicated region
        $region119: #{step.1} parent=101 // pred_check
          %p2918 = pneg %p326
        $region120: #{step.1} parent=101 // pred_check_branch
          %2920 = sbr.rel (%p2918) target = $region122
        $region121: #{step.1} parent=101 // pred_region
          _
        $region122: #{step.1} parent=101 // pred_fallthru
          _
      $region102: #{step.1} parent=5 // pred_fallthru
        _
      %p2921 = scmp.le.s32.totalorder 2, %s20
      // Predicated region
      $region123: #{step.1} parent=5 // pred_check
        %p2922 = pneg %p2921
      $region124: #{step.1} parent=5 // pred_check_branch
        %2924 = sbr.rel (%p2922) target = $region126
      $region125: #{step.1} parent=5 // pred_region
        %s2925 = ssub.s32 %s20, 2
        // Predicated region
        $region127: #{step.1} parent=125 // pred_check
          %p2926 = pneg %p311
        $region128: #{step.1} parent=125 // pred_check_branch
          %2928 = sbr.rel (%p2926) target = $region130
        $region129: #{step.1} parent=125 // pred_region
          %s2929 = smul.u32 2, %s26
          %p2930 = scmp.lt.s32.totalorder %s2929, 3
          %s2931 = scalar_select %p2930, %s2929, 3
          %s2932 = smul.addr %s2931, 8
          %s2933 = scalar_lea.vmem %s12, %s2932
        $region130: #{step.1} parent=125 // pred_fallthru
          _
      $region126: #{step.1} parent=5 // pred_fallthru
        _
    $region6: #{step.1} parent=1 // loop_footer
      %s24 = sadd.s32 1, %s20
    $region7: #{step.1} parent=1 // loop_footer_branch
      %19 = sbr.rel target = $region3
    $region8: #{step.1} parent=1 // loop_exit
      _

</llo_original>
